<compile_context>
chip_gen: v5e
topology: v5e:2x2
jax: 0.10.0
libtpu: 0.0.40
codegen_flags: <defaults>
</compile_context>

<pallas_src>
from functools import partial

import numpy as np
import jax
import jax.numpy as jnp
from jax import lax
from jax.experimental import pallas as pl
from jax.experimental.pallas import tpu as pltpu


# ----------------------------------------------------------------------------
# Fused Pallas kernel (single grid step; batch folded onto lanes in-kernel)
# ----------------------------------------------------------------------------
def _inverted_residual_kernel(x_ref, w1_ref, w2_ref, o_ref, *, H, W, use_res_connect):
    """Fused expand-1x1 -> 3x3 depthwise -> project-1x1 (+ residual), BN pre-folded.

    Layouts (channels on sublanes, flattened batch*spatial on lanes):
      x_ref : (N, cin, H*W)              o_ref : (N, oup, H*W)
      w1_ref: (hidden, cin + 9 + 2)  = [w_expand*s1 | w_dw*s2 (9 taps) | b1 | b2]
      w2_ref: (oup, hidden + 1)      = [w_project*s3 | b3]
    """
    N, cin, HW = x_ref.shape
    hidden = w1_ref.shape[0]
    NHW = N * HW
    f32 = jnp.float32

    # ---- fold batch onto the lane axis: (cin, N*HW) ----
    x = x_ref[0] if N == 1 else jnp.concatenate([x_ref[n] for n in range(N)], axis=1)

    w1 = w1_ref[...]
    we  = w1[:, 0:cin]                   # (hidden, cin)   expand weight (BN scale1 folded)
    wdw = w1[:, cin:cin + 9]             # (hidden, 9)     depthwise taps (BN scale2 folded)
    b1  = w1[:, cin + 9:cin + 10]        # (hidden, 1)
    b2  = w1[:, cin + 10:cin + 11]       # (hidden, 1)
    w2 = w2_ref[...]
    wp  = w2[:, 0:hidden]                # (oup, hidden)   project weight (BN scale3 folded)
    b3  = w2[:, hidden:hidden + 1]       # (oup, 1)

    # ---- 1) expand 1x1 conv + BN + ReLU (MXU, exact-enough HIGHEST precision) ----
    h = lax.dot_general(we, x, (((1,), (0,)), ((), ())),
                        preferred_element_type=f32, precision=lax.Precision.HIGHEST)
    h = jnp.maximum(h + b1, 0.0)                                 # (hidden, N*HW)

    # ---- 2) 3x3 depthwise conv (stride 1, pad 1) + BN + ReLU ----
    # Lane p = img*HW + row*W + col (HW and W are powers of two).  Each tap is a lane
    # rotation of the whole map (pltpu.roll -> XLU); out-of-image taps (including
    # cross-image wrap from the batch fold) are zeroed by masks built from the LOCAL
    # position lp = p & (HW - 1).
    pidx = lax.broadcasted_iota(jnp.int32, (1, NHW), 1)
    lp  = jnp.bitwise_and(pidx, HW - 1)                          # position within the image
    col = jnp.bitwise_and(lp, W - 1)                             # column within the row
    row_ok = {0: (lp >= W).astype(f32),                          # dh=0 reads row-1
              2: (lp < (H - 1) * W).astype(f32)}                 # dh=2 reads row+1
    col_ok = {0: (col != 0).astype(f32),                         # dw=0 reads col-1
              2: (col != W - 1).astype(f32)}                     # dw=2 reads col+1
    tap_mask = {}                                                # one combined (1,NHW) mask/tap
    for dh in range(3):
        for dw in range(3):
            m = row_ok.get(dh)
            if dw in col_ok:
                m = col_ok[dw] if m is None else m * col_ok[dw]
            tap_mask[(dh, dw)] = m

    acc = None
    for dh in range(3):
        for dw in range(3):
            s = (dh - 1) * W + (dw - 1)                          # flat-index offset of this tap
            v = h if s == 0 else pltpu.roll(h, shift=(-s) % NHW, axis=1)
            t = dh * 3 + dw
            term = v * wdw[:, t:t + 1]
            m = tap_mask[(dh, dw)]
            if m is not None:
                term = term * m                                  # exactly one mask mul per tap
            acc = term if acc is None else acc + term
    d = jnp.maximum(acc + b2, 0.0)                               # (hidden, N*HW)

    # ---- 3) project 1x1 conv + BN (+ residual) (MXU) ----
    y = lax.dot_general(wp, d, (((1,), (0,)), ((), ())),
                        preferred_element_type=f32, precision=lax.Precision.HIGHEST)
    y = y + b3
    if use_res_connect:
        y = y + x
    y = y.astype(o_ref.dtype)
    for n in range(N):                                           # lane-tile-aligned stores
        o_ref[n] = y[:, n * HW:(n + 1) * HW]


# ----------------------------------------------------------------------------
# Host-side parameter packing: fold BN scales into weights, 2 operands total
# ----------------------------------------------------------------------------
def pack_params(params):
    hidden, _ = params["w_expand"].shape
    we  = params["w_expand"] * params["scale1"][:, None]
    wdw = (params["w_dw"] * params["scale2"][:, None, None]).reshape(hidden, 9)
    wp  = params["w_project"] * params["scale3"][:, None]
    w1 = jnp.concatenate([we, wdw, params["bias1"][:, None], params["bias2"][:, None]], axis=1)
    w2 = jnp.concatenate([wp, params["bias3"][:, None]], axis=1)
    return w1.astype(jnp.float32), w2.astype(jnp.float32)


# ----------------------------------------------------------------------------
# Wrapper: single fused pallas_call, NCHW in / NCHW out (free reshapes only)
# ----------------------------------------------------------------------------
def inverted_residual_forward(x_nchw, w1, w2, *, stride=1):
    # TODO(synk): stride=2 and the expand_ratio==1 variant of this module (which skips both the
    #             expand AND depthwise stacks) are not implemented; this covers the exercised config.
    assert stride == 1, "only the stride=1 path is implemented"
    N, cin, H, W = x_nchw.shape
    HW = H * W
    assert (HW & (HW - 1)) == 0 and (W & (W - 1)) == 0, \
        "kernel decodes image-local row/col from the lane id with bit-ands"
    hidden = w1.shape[0]
    oup = w2.shape[0]
    use_res_connect = (stride == 1 and cin == oup)

    x3 = x_nchw.reshape(N, cin, HW)                              # free metadata reshape

    flops = 2 * N * HW * (cin * hidden + 9 * hidden + hidden * oup)
    bytes_accessed = 4 * (x3.size + N * oup * HW + w1.size + w2.size)

    kernel = partial(_inverted_residual_kernel, H=H, W=W, use_res_connect=use_res_connect)
    y3 = pl.pallas_call(
        kernel,
        out_shape=jax.ShapeDtypeStruct((N, oup, HW), jnp.float32),
        grid=(1,),                                               # batch folded onto lanes
        in_specs=[
            pl.BlockSpec((N, cin, HW), lambda i: (0, 0, 0)),     # activations
            pl.BlockSpec(w1.shape, lambda i: (0, 0)),            # packed expand/dw weights+biases
            pl.BlockSpec(w2.shape, lambda i: (0, 0)),            # packed project weight+bias
        ],
        out_specs=pl.BlockSpec((N, oup, HW), lambda i: (0, 0, 0)),
        compiler_params=pltpu.CompilerParams(dimension_semantics=("arbitrary",)),
        cost_estimate=pl.CostEstimate(flops=flops, transcendentals=0,
                                      bytes_accessed=bytes_accessed),
    )(x3, w1, w2)
    return y3.reshape(N, oup, H, W)


# ----------------------------------------------------------------------------
# Pure-JAX reference (NCHW, same folded-BN math) for correctness checking
# ----------------------------------------------------------------------------
def inverted_residual_reference(x_nchw, p, stride=1):
    N, cin, H, W = x_nchw.shape
    oup = p["w_project"].shape[0]

    def bn(t, scale, bias):
        return t * scale[None, :, None, None] + bias[None, :, None, None]

    h = jnp.einsum("nchw,dc->ndhw", x_nchw, p["w_expand"], precision="highest")
    h = jnp.maximum(bn(h, p["scale1"], p["bias1"]), 0.0)
    hp = jnp.pad(h, ((0, 0), (0, 0), (1, 1), (1, 1)))
    acc = jnp.zeros_like(h)
    for dh in range(3):
        for dw in range(3):
            acc = acc + hp[:, :, dh:dh + H, dw:dw + W] * p["w_dw"][None, :, dh, dw, None, None]
    d = jnp.maximum(bn(acc, p["scale2"], p["bias2"]), 0.0)
    y = jnp.einsum("nchw,dc->ndhw", d, p["w_project"], precision="highest")
    y = bn(y, p["scale3"], p["bias3"])
    return y + x_nchw if (stride == 1 and cin == oup) else y


# ----------------------------------------------------------------------------
# Parameter construction (PyTorch conv shapes with trivial dims squeezed, BN folded)
# ----------------------------------------------------------------------------
def _fold_bn(gamma, beta, mean, var, eps=1e-5):
    scale = gamma / jnp.sqrt(var + eps)
    return scale, beta - mean * scale


def make_params(key, inp, oup, expand_ratio):
    hidden = int(round(inp * expand_ratio))
    ks = jax.random.split(key, 6)
    # PyTorch conv weight shapes -> ours:
    #   expand  (hidden, inp, 1, 1) -> (hidden, inp)
    #   dw      (hidden, 1, 3, 3)   -> (hidden, 3, 3)
    #   project (oup, hidden, 1, 1) -> (oup, hidden)
    w_expand = 0.3 * jax.random.normal(ks[0], (hidden, inp), jnp.float32)
    w_dw = 0.3 * jax.random.normal(ks[1], (hidden, 3, 3), jnp.float32)
    w_project = 0.3 * jax.random.normal(ks[2], (oup, hidden), jnp.float32)

    def bn(k4, c):
        kg, kb, km, kv = jax.random.split(k4, 4)
        gamma = 1.0 + 0.1 * jax.random.normal(kg, (c,), jnp.float32)
        beta = 0.1 * jax.random.normal(kb, (c,), jnp.float32)
        mean = 0.1 * jax.random.normal(km, (c,), jnp.float32)
        var = 1.0 + 0.1 * jax.random.uniform(kv, (c,), jnp.float32)
        return _fold_bn(gamma, beta, mean, var)

    s1, b1 = bn(ks[3], hidden)
    s2, b2 = bn(ks[4], hidden)
    s3, b3 = bn(ks[5], oup)
    return dict(w_expand=w_expand, w_dw=w_dw, w_project=w_project,
                scale1=s1, bias1=b1, scale2=s2, bias2=b2, scale3=s3, bias3=b3)


if __name__ == "__main__":
    key = jax.random.PRNGKey(0)
    k_x, k_p = jax.random.split(key)

    # InvertedResidual(inp=4, oup=4, stride=1, expand_ratio=4) -> hidden=16, residual used.
    N, C, H, W = 2, 4, 16, 16
    x = jax.random.normal(k_x, (N, C, H, W), jnp.float32)
    params = make_params(k_p, inp=C, oup=C, expand_ratio=4)
    w1, w2 = pack_params(params)        # BN scales folded into weights, 2 packed operands

    fwd = jax.jit(inverted_residual_forward)
    out = jax.block_until_ready(fwd(x, w1, w2))

    ref = inverted_residual_reference(x, params)
    np.testing.assert_allclose(np.asarray(out), np.asarray(ref), rtol=1e-4, atol=1e-4)
    assert out.shape == (N, C, H, W)

    print("KERNEL_OK")
</pallas_src>

<mosaic_0001>
module attributes {stable_mosaic.version = 11 : i64} {
  func.func @_inverted_residual_kernel(%arg0: i32, %arg1: memref<2x4x256xf32, #tpu.memory_space<vmem>>, %arg2: memref<16x15xf32, #tpu.memory_space<vmem>>, %arg3: memref<4x17xf32, #tpu.memory_space<vmem>>, %arg4: memref<2x4x256xf32, #tpu.memory_space<vmem>>) attributes {dimension_semantics = [#tpu.dimension_semantics<arbitrary>], iteration_bounds = array<i64: 1>, scalar_prefetch = 0 : i64, scratch_operands = 0 : i64, tpu.core_type = #tpu.core_type<tc>, window_params = [{pipeline_mode = #tpu.pipeline_mode<synchronous>, transform_indices = @transform_0, window_bounds = array<i64: 2, 4, 256>}, {pipeline_mode = #tpu.pipeline_mode<synchronous>, transform_indices = @transform_1, window_bounds = array<i64: 16, 15>}, {pipeline_mode = #tpu.pipeline_mode<synchronous>, transform_indices = @transform_2, window_bounds = array<i64: 4, 17>}, {pipeline_mode = #tpu.pipeline_mode<synchronous>, transform_indices = @transform_3, window_bounds = array<i64: 2, 4, 256>}]} {
    %c0 = arith.constant 0 : index
    %c0_0 = arith.constant 0 : index
    %c0_1 = arith.constant 0 : index
    %0 = vector.load %arg1[%c0, %c0_0, %c0_1] : memref<2x4x256xf32, #tpu.memory_space<vmem>>, vector<1x4x256xf32>
    %1 = vector.shape_cast %0 : vector<1x4x256xf32> to vector<4x256xf32>
    %c1 = arith.constant 1 : index
    %c0_2 = arith.constant 0 : index
    %c0_3 = arith.constant 0 : index
    %2 = vector.load %arg1[%c1, %c0_2, %c0_3] : memref<2x4x256xf32, #tpu.memory_space<vmem>>, vector<1x4x256xf32>
    %3 = vector.shape_cast %2 : vector<1x4x256xf32> to vector<4x256xf32>
    %4 = tpu.concatenate %1, %3 in 1 : vector<4x256xf32>, vector<4x256xf32> -> vector<4x512xf32>
    %c0_4 = arith.constant 0 : index
    %c0_5 = arith.constant 0 : index
    %5 = vector.load %arg2[%c0_4, %c0_5] : memref<16x15xf32, #tpu.memory_space<vmem>>, vector<16x15xf32>
    %6 = vector.extract_strided_slice %5 {offsets = [0, 0], sizes = [16, 4], strides = [1, 1]} : vector<16x15xf32> to vector<16x4xf32>
    %7 = vector.extract_strided_slice %5 {offsets = [0, 4], sizes = [16, 9], strides = [1, 1]} : vector<16x15xf32> to vector<16x9xf32>
    %8 = vector.extract_strided_slice %5 {offsets = [0, 13], sizes = [16, 1], strides = [1, 1]} : vector<16x15xf32> to vector<16x1xf32>
    %9 = vector.extract_strided_slice %5 {offsets = [0, 14], sizes = [16, 1], strides = [1, 1]} : vector<16x15xf32> to vector<16x1xf32>
    %c0_6 = arith.constant 0 : index
    %c0_7 = arith.constant 0 : index
    %10 = vector.load %arg3[%c0_6, %c0_7] : memref<4x17xf32, #tpu.memory_space<vmem>>, vector<4x17xf32>
    %11 = vector.extract_strided_slice %10 {offsets = [0, 0], sizes = [4, 16], strides = [1, 1]} : vector<4x17xf32> to vector<4x16xf32>
    %12 = vector.extract_strided_slice %10 {offsets = [0, 16], sizes = [4, 1], strides = [1, 1]} : vector<4x17xf32> to vector<4x1xf32>
    %cst = arith.constant dense<0.000000e+00> : vector<16x512xf32>
    %13 = tpu.matmul %6, %4, %cst {dimension_numbers = #tpu.dot_dimension_numbers<[1], [0], [0], [1], [0, 0, 1, 1], [], []>, precision = #tpu.contract_precision<fp32>} : vector<16x4xf32>, vector<4x512xf32>, vector<16x512xf32> -> vector<16x512xf32>
    %14 = vector.broadcast %8 : vector<16x1xf32> to vector<16x512xf32>
    %15 = arith.addf %13, %14 : vector<16x512xf32>
    %cst_8 = arith.constant 0.000000e+00 : f32
    %16 = vector.broadcast %cst_8 : f32 to vector<16x512xf32>
    %17 = arith.maximumf %15, %16 : vector<16x512xf32>
    %18 = tpu.iota {dimensions = array<i32: 1>} : vector<1x512xi32>
    %c255_i32 = arith.constant 255 : i32
    %19 = vector.broadcast %c255_i32 : i32 to vector<1x512xi32>
    %20 = arith.andi %18, %19 : vector<1x512xi32>
    %c15_i32 = arith.constant 15 : i32
    %21 = vector.broadcast %c15_i32 : i32 to vector<1x512xi32>
    %22 = arith.andi %20, %21 : vector<1x512xi32>
    %c16_i32 = arith.constant 16 : i32
    %23 = vector.broadcast %c16_i32 : i32 to vector<1x512xi32>
    %24 = arith.cmpi sge, %20, %23 : vector<1x512xi32>
    %25 = arith.extui %24 : vector<1x512xi1> to vector<1x512xi32>
    %26 = arith.sitofp %25 : vector<1x512xi32> to vector<1x512xf32>
    %c240_i32 = arith.constant 240 : i32
    %27 = vector.broadcast %c240_i32 : i32 to vector<1x512xi32>
    %28 = arith.cmpi slt, %20, %27 : vector<1x512xi32>
    %29 = arith.extui %28 : vector<1x512xi1> to vector<1x512xi32>
    %30 = arith.sitofp %29 : vector<1x512xi32> to vector<1x512xf32>
    %c0_i32 = arith.constant 0 : i32
    %31 = vector.broadcast %c0_i32 : i32 to vector<1x512xi32>
    %32 = arith.cmpi ne, %22, %31 : vector<1x512xi32>
    %33 = arith.extui %32 : vector<1x512xi1> to vector<1x512xi32>
    %34 = arith.sitofp %33 : vector<1x512xi32> to vector<1x512xf32>
    %c15_i32_9 = arith.constant 15 : i32
    %35 = vector.broadcast %c15_i32_9 : i32 to vector<1x512xi32>
    %36 = arith.cmpi ne, %22, %35 : vector<1x512xi32>
    %37 = arith.extui %36 : vector<1x512xi1> to vector<1x512xi32>
    %38 = arith.sitofp %37 : vector<1x512xi32> to vector<1x512xf32>
    %39 = arith.mulf %26, %34 : vector<1x512xf32>
    %40 = arith.mulf %26, %38 : vector<1x512xf32>
    %41 = arith.mulf %30, %34 : vector<1x512xf32>
    %42 = arith.mulf %30, %38 : vector<1x512xf32>
    %c17_i32 = arith.constant 17 : i32
    %43 = tpu.dynamic_rotate %17 by %c17_i32 dim 1 : vector<16x512xf32>, i32 -> vector<16x512xf32>
    %44 = vector.extract_strided_slice %7 {offsets = [0, 0], sizes = [16, 1], strides = [1, 1]} : vector<16x9xf32> to vector<16x1xf32>
    %45 = vector.broadcast %44 : vector<16x1xf32> to vector<16x512xf32>
    %46 = arith.mulf %43, %45 : vector<16x512xf32>
    %47 = vector.broadcast %39 : vector<1x512xf32> to vector<16x512xf32>
    %48 = arith.mulf %46, %47 : vector<16x512xf32>
    %c16_i32_10 = arith.constant 16 : i32
    %49 = tpu.dynamic_rotate %17 by %c16_i32_10 dim 1 : vector<16x512xf32>, i32 -> vector<16x512xf32>
    %50 = vector.extract_strided_slice %7 {offsets = [0, 1], sizes = [16, 1], strides = [1, 1]} : vector<16x9xf32> to vector<16x1xf32>
    %51 = vector.broadcast %50 : vector<16x1xf32> to vector<16x512xf32>
    %52 = arith.mulf %49, %51 : vector<16x512xf32>
    %53 = vector.broadcast %26 : vector<1x512xf32> to vector<16x512xf32>
    %54 = arith.mulf %52, %53 : vector<16x512xf32>
    %55 = arith.addf %48, %54 : vector<16x512xf32>
    %c15_i32_11 = arith.constant 15 : i32
    %56 = tpu.dynamic_rotate %17 by %c15_i32_11 dim 1 : vector<16x512xf32>, i32 -> vector<16x512xf32>
    %57 = vector.extract_strided_slice %7 {offsets = [0, 2], sizes = [16, 1], strides = [1, 1]} : vector<16x9xf32> to vector<16x1xf32>
    %58 = vector.broadcast %57 : vector<16x1xf32> to vector<16x512xf32>
    %59 = arith.mulf %56, %58 : vector<16x512xf32>
    %60 = vector.broadcast %40 : vector<1x512xf32> to vector<16x512xf32>
    %61 = arith.mulf %59, %60 : vector<16x512xf32>
    %62 = arith.addf %55, %61 : vector<16x512xf32>
    %c1_i32 = arith.constant 1 : i32
    %63 = tpu.dynamic_rotate %17 by %c1_i32 dim 1 : vector<16x512xf32>, i32 -> vector<16x512xf32>
    %64 = vector.extract_strided_slice %7 {offsets = [0, 3], sizes = [16, 1], strides = [1, 1]} : vector<16x9xf32> to vector<16x1xf32>
    %65 = vector.broadcast %64 : vector<16x1xf32> to vector<16x512xf32>
    %66 = arith.mulf %63, %65 : vector<16x512xf32>
    %67 = vector.broadcast %34 : vector<1x512xf32> to vector<16x512xf32>
    %68 = arith.mulf %66, %67 : vector<16x512xf32>
    %69 = arith.addf %62, %68 : vector<16x512xf32>
    %70 = vector.extract_strided_slice %7 {offsets = [0, 4], sizes = [16, 1], strides = [1, 1]} : vector<16x9xf32> to vector<16x1xf32>
    %71 = vector.broadcast %70 : vector<16x1xf32> to vector<16x512xf32>
    %72 = arith.mulf %17, %71 : vector<16x512xf32>
    %73 = arith.addf %69, %72 : vector<16x512xf32>
    %c511_i32 = arith.constant 511 : i32
    %74 = tpu.dynamic_rotate %17 by %c511_i32 dim 1 : vector<16x512xf32>, i32 -> vector<16x512xf32>
    %75 = vector.extract_strided_slice %7 {offsets = [0, 5], sizes = [16, 1], strides = [1, 1]} : vector<16x9xf32> to vector<16x1xf32>
    %76 = vector.broadcast %75 : vector<16x1xf32> to vector<16x512xf32>
    %77 = arith.mulf %74, %76 : vector<16x512xf32>
    %78 = vector.broadcast %38 : vector<1x512xf32> to vector<16x512xf32>
    %79 = arith.mulf %77, %78 : vector<16x512xf32>
    %80 = arith.addf %73, %79 : vector<16x512xf32>
    %c497_i32 = arith.constant 497 : i32
    %81 = tpu.dynamic_rotate %17 by %c497_i32 dim 1 : vector<16x512xf32>, i32 -> vector<16x512xf32>
    %82 = vector.extract_strided_slice %7 {offsets = [0, 6], sizes = [16, 1], strides = [1, 1]} : vector<16x9xf32> to vector<16x1xf32>
    %83 = vector.broadcast %82 : vector<16x1xf32> to vector<16x512xf32>
    %84 = arith.mulf %81, %83 : vector<16x512xf32>
    %85 = vector.broadcast %41 : vector<1x512xf32> to vector<16x512xf32>
    %86 = arith.mulf %84, %85 : vector<16x512xf32>
    %87 = arith.addf %80, %86 : vector<16x512xf32>
    %c496_i32 = arith.constant 496 : i32
    %88 = tpu.dynamic_rotate %17 by %c496_i32 dim 1 : vector<16x512xf32>, i32 -> vector<16x512xf32>
    %89 = vector.extract_strided_slice %7 {offsets = [0, 7], sizes = [16, 1], strides = [1, 1]} : vector<16x9xf32> to vector<16x1xf32>
    %90 = vector.broadcast %89 : vector<16x1xf32> to vector<16x512xf32>
    %91 = arith.mulf %88, %90 : vector<16x512xf32>
    %92 = vector.broadcast %30 : vector<1x512xf32> to vector<16x512xf32>
    %93 = arith.mulf %91, %92 : vector<16x512xf32>
    %94 = arith.addf %87, %93 : vector<16x512xf32>
    %c495_i32 = arith.constant 495 : i32
    %95 = tpu.dynamic_rotate %17 by %c495_i32 dim 1 : vector<16x512xf32>, i32 -> vector<16x512xf32>
    %96 = vector.extract_strided_slice %7 {offsets = [0, 8], sizes = [16, 1], strides = [1, 1]} : vector<16x9xf32> to vector<16x1xf32>
    %97 = vector.broadcast %96 : vector<16x1xf32> to vector<16x512xf32>
    %98 = arith.mulf %95, %97 : vector<16x512xf32>
    %99 = vector.broadcast %42 : vector<1x512xf32> to vector<16x512xf32>
    %100 = arith.mulf %98, %99 : vector<16x512xf32>
    %101 = arith.addf %94, %100 : vector<16x512xf32>
    %102 = vector.broadcast %9 : vector<16x1xf32> to vector<16x512xf32>
    %103 = arith.addf %101, %102 : vector<16x512xf32>
    %cst_12 = arith.constant 0.000000e+00 : f32
    %104 = vector.broadcast %cst_12 : f32 to vector<16x512xf32>
    %105 = arith.maximumf %103, %104 : vector<16x512xf32>
    %cst_13 = arith.constant dense<0.000000e+00> : vector<4x512xf32>
    %106 = tpu.matmul %11, %105, %cst_13 {dimension_numbers = #tpu.dot_dimension_numbers<[1], [0], [0], [1], [0, 0, 1, 1], [], []>, precision = #tpu.contract_precision<fp32>} : vector<4x16xf32>, vector<16x512xf32>, vector<4x512xf32> -> vector<4x512xf32>
    %107 = vector.broadcast %12 : vector<4x1xf32> to vector<4x512xf32>
    %108 = arith.addf %106, %107 : vector<4x512xf32>
    %109 = arith.addf %108, %4 : vector<4x512xf32>
    %110 = vector.extract_strided_slice %109 {offsets = [0, 0], sizes = [4, 256], strides = [1, 1]} : vector<4x512xf32> to vector<4x256xf32>
    %c0_14 = arith.constant 0 : index
    %c0_15 = arith.constant 0 : index
    %c0_16 = arith.constant 0 : index
    %111 = vector.load %arg4[%c0_14, %c0_15, %c0_16] : memref<2x4x256xf32, #tpu.memory_space<vmem>>, vector<1x4x256xf32>
    %112 = vector.shape_cast %111 : vector<1x4x256xf32> to vector<4x256xf32>
    %113 = vector.shape_cast %110 : vector<4x256xf32> to vector<1x4x256xf32>
    tpu.vector_store %arg4[%c0_14, %c0_15, %c0_16], %113 {strides = array<i32>} : memref<2x4x256xf32, #tpu.memory_space<vmem>>, vector<1x4x256xf32>,
    %114 = vector.extract_strided_slice %109 {offsets = [0, 256], sizes = [4, 256], strides = [1, 1]} : vector<4x512xf32> to vector<4x256xf32>
    %c1_17 = arith.constant 1 : index
    %c0_18 = arith.constant 0 : index
    %c0_19 = arith.constant 0 : index
    %115 = vector.load %arg4[%c1_17, %c0_18, %c0_19] : memref<2x4x256xf32, #tpu.memory_space<vmem>>, vector<1x4x256xf32>
    %116 = vector.shape_cast %115 : vector<1x4x256xf32> to vector<4x256xf32>
    %117 = vector.shape_cast %114 : vector<4x256xf32> to vector<1x4x256xf32>
    tpu.vector_store %arg4[%c1_17, %c0_18, %c0_19], %117 {strides = array<i32>} : memref<2x4x256xf32, #tpu.memory_space<vmem>>, vector<1x4x256xf32>,
    return
  }
  func.func @transform_0(%arg0: i32) -> (i32, i32, i32) {
    %c0_i32 = arith.constant 0 : i32
    %c0_i32_0 = arith.constant 0 : i32
    %c0_i32_1 = arith.constant 0 : i32
    %c0_i32_2 = arith.constant 0 : i32
    return %c0_i32, %c0_i32_0, %c0_i32_1 : i32, i32, i32
  }
  func.func @transform_1(%arg0: i32) -> (i32, i32) {
    %c0_i32 = arith.constant 0 : i32
    %c0_i32_0 = arith.constant 0 : i32
    %c0_i32_1 = arith.constant 0 : i32
    return %c0_i32, %c0_i32_0 : i32, i32
  }
  func.func @transform_2(%arg0: i32) -> (i32, i32) {
    %c0_i32 = arith.constant 0 : i32
    %c0_i32_0 = arith.constant 0 : i32
    %c0_i32_1 = arith.constant 0 : i32
    return %c0_i32, %c0_i32_0 : i32, i32
  }
  func.func @transform_3(%arg0: i32) -> (i32, i32, i32) {
    %c0_i32 = arith.constant 0 : i32
    %c0_i32_0 = arith.constant 0 : i32
    %c0_i32_1 = arith.constant 0 : i32
    %c0_i32_2 = arith.constant 0 : i32
    return %c0_i32, %c0_i32_0, %c0_i32_1 : i32, i32, i32
  }
}

</mosaic_0001>

<llo_original>
// kernel: inverted_residual_forward.1
$region0: #{inverted_residual_forward.1}
  #allocation0 [shape = 'u32[]', space=smem, size = 0x4, offset = 0x4, fixed_abs, tag = 'smem constant byte address 0x4 - core index']
  #allocation1 [shape = 'u32[72,128]{1,0:T(1,128)}', space=vmem, size = 0x9000, scoped, tag = 'internal scratch']
  %s0 = inlined_call_operand.vmem [shape: f32[2,4,256], index: 0, kind: input, shape index: {}]
  %s1 = inlined_call_operand.vmem [shape: f32[16,15], index: 1, kind: input, shape index: {}]
  %s2 = inlined_call_operand.vmem [shape: f32[4,17], index: 2, kind: input, shape index: {}]
  %s3 = inlined_call_operand.vmem [shape: f32[2,4,256], index: 3, kind: output, shape index: {}]
  %s4 = sld [smem:[#allocation0]]
  $region22: #{inverted_residual_forward.1} parent=0
    _
  %s6 = ssub.s32 1, %s4
  %s7 = scalar_select 0, %s6, %s4
  // Predicated region
  $region2: #{inverted_residual_forward.1} parent=0 // pred_check
    _
  $region3: #{inverted_residual_forward.1} parent=0 // pred_check_branch
    %9 = sbr.rel (0) target = $region5
  $region4: #{inverted_residual_forward.1} parent=0 // pred_region
    _
  $region5: #{inverted_residual_forward.1} parent=0 // pred_fallthru
    _
  // Predicated region
  $region6: #{inverted_residual_forward.1} parent=0 // pred_check
    _
  $region7: #{inverted_residual_forward.1} parent=0 // pred_check_branch
    %11 = sbr.rel (0) target = $region9
  $region8: #{inverted_residual_forward.1} parent=0 // pred_region
    _
  $region9: #{inverted_residual_forward.1} parent=0 // pred_fallthru
    _
  // Predicated region
  $region10: #{inverted_residual_forward.1} parent=0 // pred_check
    _
  $region11: #{inverted_residual_forward.1} parent=0 // pred_check_branch
    %13 = sbr.rel (0) target = $region13
  $region12: #{inverted_residual_forward.1} parent=0 // pred_region
    _
  $region13: #{inverted_residual_forward.1} parent=0 // pred_fallthru
    _
  %v14 = vld [vmem:[%s0] sm:$0xff]
  %s15 = scalar_lea.vmem %s0, 8
  %v16 = vld [vmem:[%s15] sm:$0xff]
  %18 = vst [vmem:[#allocation1] ss:$2 sm:$0xff] %v14
  %v19 = vld.sshfl [vmem:[#allocation1] sm:$0xff pattern:$0x75316420]
  %v20 = vld.sshfl [vmem:[#allocation1 + $0x8] sm:$0xff pattern:$0x75316420]
  %24 = vst [vmem:[#allocation1] ss:$2 sm:$0xff] %v16
  %v25 = vld.sshfl [vmem:[#allocation1] sm:$0xff pattern:$0x75316420]
  %v26 = vld.sshfl [vmem:[#allocation1 + $0x8] sm:$0xff pattern:$0x75316420]
  %v29 = vld [vmem:[%s1] sm:$0xff]
  %v30 = vld [vmem:[%s1 + $0x8] sm:$0xff]
  %v31 = vld [vmem:[%s2] sm:$0xf]
  %33 = vset.pattern.permute.xlu0 13
  %34 = vperm.xlu0 %33, %v29
  %v35 = vpop.permute.xlu0 %34
  %38 = vset.pattern.permute.xlu0 13
  %39 = vperm.xlu0 %38, %v30
  %v40 = vpop.permute.xlu0 %39
  %vm42 = vcmask 31744
  %v43 = vsel %vm42, %v29, 0
  %v45 = vsel %vm42, %v30, 0
  %vm47 = vcmask 1043456
  %v48 = vsel %vm47, %v19, 0
  %v50 = vsel %vm47, %v20, 0
  %v52 = vsel %vm47, %v25, 0
  %v54 = vsel %vm47, %v26, 0
  %56 = vmatpush.msra.mxu0 0.0
  %57 = vmatpush.msra.mxu0 0.0
  %58 = vmatpush.msra.mxu0 0.0
  %59 = vmatpush.msra.mxu0 0.0
  %60 = vmatpush.msra.mxu0 0.0
  %61 = vmatpush.msra.mxu0 0.0
  %62 = vmatpush.msra.mxu0 0.0
  %63 = vmatpush.msra.mxu0 0.0
  %64 = vmatpush.msra.mxu0 0.0
  %65 = vmatpush.msra.mxu0 0.0
  %66 = vmatpush.msra.mxu0 0.0
  %67 = vmatpush.msra.mxu0 0.0
  %68 = vmatpush.msra.mxu0 0.0
  %69 = vmatpush.msra.mxu0 0.0
  %70 = vmatpush.msra.mxu0 0.0
  %v71 = vand.u32 %v48, 4294901760
  %72 = vmatpush.msra.mxu0 %v71
  %v73 = vand.u32 %v43, 4294901760
  %v74 = vsub.f32 %v43, %v73
  %v75 = vand.u32 %v74, 4294901760
  %v76 = vsub.f32 %v74, %v75
  %v77 = vand.u32 %v76, 4294901760
  %78 = vmatmul.f32.gmra.mxu0 %v77
  %v79 = vpop.f32.mrf.mxu0
  %v80 = vadd.f32 %v35, %v79
  %v81 = vand.u32 %v45, 4294901760
  %v82 = vsub.f32 %v45, %v81
  %v83 = vand.u32 %v82, 4294901760
  %v84 = vsub.f32 %v82, %v83
  %v85 = vand.u32 %v84, 4294901760
  %86 = vmatmul.f32.gmra.mxu0 %v85
  %v87 = vpop.f32.mrf.mxu0
  %v88 = vadd.f32 %v40, %v87
  %89 = vdwg.mxu0
  %90 = vmatpush.msra.mxu0 0.0
  %91 = vmatpush.msra.mxu0 0.0
  %92 = vmatpush.msra.mxu0 0.0
  %93 = vmatpush.msra.mxu0 0.0
  %94 = vmatpush.msra.mxu0 0.0
  %95 = vmatpush.msra.mxu0 0.0
  %96 = vmatpush.msra.mxu0 0.0
  %97 = vmatpush.msra.mxu0 0.0
  %98 = vmatpush.msra.mxu0 0.0
  %99 = vmatpush.msra.mxu0 0.0
  %100 = vmatpush.msra.mxu0 0.0
  %101 = vmatpush.msra.mxu0 0.0
  %102 = vmatpush.msra.mxu0 0.0
  %103 = vmatpush.msra.mxu0 0.0
  %104 = vmatpush.msra.mxu0 0.0
  %v105 = vand.u32 %v48, 4294901760
  %v106 = vsub.f32 %v48, %v105
  %v107 = vand.u32 %v106, 4294901760
  %v108 = vsub.f32 %v106, %v107
  %v109 = vand.u32 %v108, 4294901760
  %110 = vmatpush.msra.mxu0 %v109
  %v111 = vand.u32 %v43, 4294901760
  %112 = vmatmul.f32.gmra.mxu0 %v111
  %v113 = vpop.f32.mrf.mxu0
  %v114 = vadd.f32 %v80, %v113
  %v115 = vand.u32 %v45, 4294901760
  %116 = vmatmul.f32.gmra.mxu0 %v115
  %v117 = vpop.f32.mrf.mxu0
  %v118 = vadd.f32 %v88, %v117
  %119 = vdwg.mxu0
  %120 = vmatpush.msra.mxu0 0.0
  %121 = vmatpush.msra.mxu0 0.0
  %122 = vmatpush.msra.mxu0 0.0
  %123 = vmatpush.msra.mxu0 0.0
  %124 = vmatpush.msra.mxu0 0.0
  %125 = vmatpush.msra.mxu0 0.0
  %126 = vmatpush.msra.mxu0 0.0
  %127 = vmatpush.msra.mxu0 0.0
  %128 = vmatpush.msra.mxu0 0.0
  %129 = vmatpush.msra.mxu0 0.0
  %130 = vmatpush.msra.mxu0 0.0
  %131 = vmatpush.msra.mxu0 0.0
  %132 = vmatpush.msra.mxu0 0.0
  %133 = vmatpush.msra.mxu0 0.0
  %134 = vmatpush.msra.mxu0 0.0
  %v135 = vand.u32 %v48, 4294901760
  %v136 = vsub.f32 %v48, %v135
  %137 = vmatpush.msra.mxu0 %v136
  %v138 = vand.u32 %v43, 4294901760
  %v139 = vsub.f32 %v43, %v138
  %140 = vmatmul.f32.gmra.mxu0 %v139
  %v141 = vpop.f32.mrf.mxu0
  %v142 = vadd.f32 %v114, %v141
  %v143 = vand.u32 %v45, 4294901760
  %v144 = vsub.f32 %v45, %v143
  %145 = vmatmul.f32.gmra.mxu0 %v144
  %v146 = vpop.f32.mrf.mxu0
  %v147 = vadd.f32 %v118, %v146
  %148 = vdwg.mxu0
  %149 = vmatpush.msra.mxu0 0.0
  %150 = vmatpush.msra.mxu0 0.0
  %151 = vmatpush.msra.mxu0 0.0
  %152 = vmatpush.msra.mxu0 0.0
  %153 = vmatpush.msra.mxu0 0.0
  %154 = vmatpush.msra.mxu0 0.0
  %155 = vmatpush.msra.mxu0 0.0
  %156 = vmatpush.msra.mxu0 0.0
  %157 = vmatpush.msra.mxu0 0.0
  %158 = vmatpush.msra.mxu0 0.0
  %159 = vmatpush.msra.mxu0 0.0
  %160 = vmatpush.msra.mxu0 0.0
  %161 = vmatpush.msra.mxu0 0.0
  %162 = vmatpush.msra.mxu0 0.0
  %163 = vmatpush.msra.mxu0 0.0
  %v164 = vand.u32 %v48, 4294901760
  %165 = vmatpush.msra.mxu0 %v164
  %v166 = vand.u32 %v43, 4294901760
  %v167 = vsub.f32 %v43, %v166
  %v168 = vand.u32 %v167, 4294901760
  %169 = vmatmul.f32.gmra.mxu0 %v168
  %v170 = vpop.f32.mrf.mxu0
  %v171 = vadd.f32 %v142, %v170
  %v172 = vand.u32 %v45, 4294901760
  %v173 = vsub.f32 %v45, %v172
  %v174 = vand.u32 %v173, 4294901760
  %175 = vmatmul.f32.gmra.mxu0 %v174
  %v176 = vpop.f32.mrf.mxu0
  %v177 = vadd.f32 %v147, %v176
  %178 = vdwg.mxu0
  %179 = vmatpush.msra.mxu0 0.0
  %180 = vmatpush.msra.mxu0 0.0
  %181 = vmatpush.msra.mxu0 0.0
  %182 = vmatpush.msra.mxu0 0.0
  %183 = vmatpush.msra.mxu0 0.0
  %184 = vmatpush.msra.mxu0 0.0
  %185 = vmatpush.msra.mxu0 0.0
  %186 = vmatpush.msra.mxu0 0.0
  %187 = vmatpush.msra.mxu0 0.0
  %188 = vmatpush.msra.mxu0 0.0
  %189 = vmatpush.msra.mxu0 0.0
  %190 = vmatpush.msra.mxu0 0.0
  %191 = vmatpush.msra.mxu0 0.0
  %192 = vmatpush.msra.mxu0 0.0
  %193 = vmatpush.msra.mxu0 0.0
  %v194 = vand.u32 %v48, 4294901760
  %v195 = vsub.f32 %v48, %v194
  %v196 = vand.u32 %v195, 4294901760
  %197 = vmatpush.msra.mxu0 %v196
  %v198 = vand.u32 %v43, 4294901760
  %199 = vmatmul.f32.gmra.mxu0 %v198
  %v200 = vpop.f32.mrf.mxu0
  %v201 = vadd.f32 %v171, %v200
  %v202 = vand.u32 %v45, 4294901760
  %203 = vmatmul.f32.gmra.mxu0 %v202
  %v204 = vpop.f32.mrf.mxu0
  %v205 = vadd.f32 %v177, %v204
  %206 = vdwg.mxu0
  %207 = vmatpush.msra.mxu0 0.0
  %208 = vmatpush.msra.mxu0 0.0
  %209 = vmatpush.msra.mxu0 0.0
  %210 = vmatpush.msra.mxu0 0.0
  %211 = vmatpush.msra.mxu0 0.0
  %212 = vmatpush.msra.mxu0 0.0
  %213 = vmatpush.msra.mxu0 0.0
  %214 = vmatpush.msra.mxu0 0.0
  %215 = vmatpush.msra.mxu0 0.0
  %216 = vmatpush.msra.mxu0 0.0
  %217 = vmatpush.msra.mxu0 0.0
  %218 = vmatpush.msra.mxu0 0.0
  %219 = vmatpush.msra.mxu0 0.0
  %220 = vmatpush.msra.mxu0 0.0
  %221 = vmatpush.msra.mxu0 0.0
  %v222 = vand.u32 %v48, 4294901760
  %223 = vmatpush.msra.mxu0 %v222
  %v224 = vand.u32 %v43, 4294901760
  %225 = vmatmul.f32.gmra.mxu0 %v224
  %v226 = vpop.f32.mrf.mxu0
  %v227 = vadd.f32 %v201, %v226
  %v228 = vand.u32 %v45, 4294901760
  %229 = vmatmul.f32.gmra.mxu0 %v228
  %v230 = vpop.f32.mrf.mxu0
  %v231 = vadd.f32 %v205, %v230
  %232 = vdwg.mxu0
  %233 = vmatpush.msra.mxu0 0.0
  %234 = vmatpush.msra.mxu0 0.0
  %235 = vmatpush.msra.mxu0 0.0
  %236 = vmatpush.msra.mxu0 0.0
  %237 = vmatpush.msra.mxu0 0.0
  %238 = vmatpush.msra.mxu0 0.0
  %239 = vmatpush.msra.mxu0 0.0
  %240 = vmatpush.msra.mxu0 0.0
  %241 = vmatpush.msra.mxu0 0.0
  %242 = vmatpush.msra.mxu0 0.0
  %243 = vmatpush.msra.mxu0 0.0
  %244 = vmatpush.msra.mxu0 0.0
  %245 = vmatpush.msra.mxu0 0.0
  %246 = vmatpush.msra.mxu0 0.0
  %247 = vmatpush.msra.mxu0 0.0
  %v248 = vand.u32 %v50, 4294901760
  %249 = vmatpush.msra.mxu0 %v248
  %v250 = vand.u32 %v43, 4294901760
  %v251 = vsub.f32 %v43, %v250
  %v252 = vand.u32 %v251, 4294901760
  %v253 = vsub.f32 %v251, %v252
  %v254 = vand.u32 %v253, 4294901760
  %255 = vmatmul.f32.gmra.mxu0 %v254
  %v256 = vpop.f32.mrf.mxu0
  %v257 = vadd.f32 %v35, %v256
  %v258 = vand.u32 %v45, 4294901760
  %v259 = vsub.f32 %v45, %v258
  %v260 = vand.u32 %v259, 4294901760
  %v261 = vsub.f32 %v259, %v260
  %v262 = vand.u32 %v261, 4294901760
  %263 = vmatmul.f32.gmra.mxu0 %v262
  %v264 = vpop.f32.mrf.mxu0
  %v265 = vadd.f32 %v40, %v264
  %266 = vdwg.mxu0
  %267 = vmatpush.msra.mxu0 0.0
  %268 = vmatpush.msra.mxu0 0.0
  %269 = vmatpush.msra.mxu0 0.0
  %270 = vmatpush.msra.mxu0 0.0
  %271 = vmatpush.msra.mxu0 0.0
  %272 = vmatpush.msra.mxu0 0.0
  %273 = vmatpush.msra.mxu0 0.0
  %274 = vmatpush.msra.mxu0 0.0
  %275 = vmatpush.msra.mxu0 0.0
  %276 = vmatpush.msra.mxu0 0.0
  %277 = vmatpush.msra.mxu0 0.0
  %278 = vmatpush.msra.mxu0 0.0
  %279 = vmatpush.msra.mxu0 0.0
  %280 = vmatpush.msra.mxu0 0.0
  %281 = vmatpush.msra.mxu0 0.0
  %v282 = vand.u32 %v50, 4294901760
  %v283 = vsub.f32 %v50, %v282
  %v284 = vand.u32 %v283, 4294901760
  %v285 = vsub.f32 %v283, %v284
  %v286 = vand.u32 %v285, 4294901760
  %287 = vmatpush.msra.mxu0 %v286
  %v288 = vand.u32 %v43, 4294901760
  %289 = vmatmul.f32.gmra.mxu0 %v288
  %v290 = vpop.f32.mrf.mxu0
  %v291 = vadd.f32 %v257, %v290
  %v292 = vand.u32 %v45, 4294901760
  %293 = vmatmul.f32.gmra.mxu0 %v292
  %v294 = vpop.f32.mrf.mxu0
  %v295 = vadd.f32 %v265, %v294
  %296 = vdwg.mxu0
  %297 = vmatpush.msra.mxu0 0.0
  %298 = vmatpush.msra.mxu0 0.0
  %299 = vmatpush.msra.mxu0 0.0
  %300 = vmatpush.msra.mxu0 0.0
  %301 = vmatpush.msra.mxu0 0.0
  %302 = vmatpush.msra.mxu0 0.0
  %303 = vmatpush.msra.mxu0 0.0
  %304 = vmatpush.msra.mxu0 0.0
  %305 = vmatpush.msra.mxu0 0.0
  %306 = vmatpush.msra.mxu0 0.0
  %307 = vmatpush.msra.mxu0 0.0
  %308 = vmatpush.msra.mxu0 0.0
  %309 = vmatpush.msra.mxu0 0.0
  %310 = vmatpush.msra.mxu0 0.0
  %311 = vmatpush.msra.mxu0 0.0
  %v312 = vand.u32 %v50, 4294901760
  %v313 = vsub.f32 %v50, %v312
  %314 = vmatpush.msra.mxu0 %v313
  %v315 = vand.u32 %v43, 4294901760
  %v316 = vsub.f32 %v43, %v315
  %317 = vmatmul.f32.gmra.mxu0 %v316
  %v318 = vpop.f32.mrf.mxu0
  %v319 = vadd.f32 %v291, %v318
  %v320 = vand.u32 %v45, 4294901760
  %v321 = vsub.f32 %v45, %v320
  %322 = vmatmul.f32.gmra.mxu0 %v321
  %v323 = vpop.f32.mrf.mxu0
  %v324 = vadd.f32 %v295, %v323
  %325 = vdwg.mxu0
  %326 = vmatpush.msra.mxu0 0.0
  %327 = vmatpush.msra.mxu0 0.0
  %328 = vmatpush.msra.mxu0 0.0
  %329 = vmatpush.msra.mxu0 0.0
  %330 = vmatpush.msra.mxu0 0.0
  %331 = vmatpush.msra.mxu0 0.0
  %332 = vmatpush.msra.mxu0 0.0
  %333 = vmatpush.msra.mxu0 0.0
  %334 = vmatpush.msra.mxu0 0.0
  %335 = vmatpush.msra.mxu0 0.0
  %336 = vmatpush.msra.mxu0 0.0
  %337 = vmatpush.msra.mxu0 0.0
  %338 = vmatpush.msra.mxu0 0.0
  %339 = vmatpush.msra.mxu0 0.0
  %340 = vmatpush.msra.mxu0 0.0
  %v341 = vand.u32 %v50, 4294901760
  %342 = vmatpush.msra.mxu0 %v341
  %v343 = vand.u32 %v43, 4294901760
  %v344 = vsub.f32 %v43, %v343
  %v345 = vand.u32 %v344, 4294901760
  %346 = vmatmul.f32.gmra.mxu0 %v345
  %v347 = vpop.f32.mrf.mxu0
  %v348 = vadd.f32 %v319, %v347
  %v349 = vand.u32 %v45, 4294901760
  %v350 = vsub.f32 %v45, %v349
  %v351 = vand.u32 %v350, 4294901760
  %352 = vmatmul.f32.gmra.mxu0 %v351
  %v353 = vpop.f32.mrf.mxu0
  %v354 = vadd.f32 %v324, %v353
  %355 = vdwg.mxu0
  %356 = vmatpush.msra.mxu0 0.0
  %357 = vmatpush.msra.mxu0 0.0
  %358 = vmatpush.msra.mxu0 0.0
  %359 = vmatpush.msra.mxu0 0.0
  %360 = vmatpush.msra.mxu0 0.0
  %361 = vmatpush.msra.mxu0 0.0
  %362 = vmatpush.msra.mxu0 0.0
  %363 = vmatpush.msra.mxu0 0.0
  %364 = vmatpush.msra.mxu0 0.0
  %365 = vmatpush.msra.mxu0 0.0
  %366 = vmatpush.msra.mxu0 0.0
  %367 = vmatpush.msra.mxu0 0.0
  %368 = vmatpush.msra.mxu0 0.0
  %369 = vmatpush.msra.mxu0 0.0
  %370 = vmatpush.msra.mxu0 0.0
  %v371 = vand.u32 %v50, 4294901760
  %v372 = vsub.f32 %v50, %v371
  %v373 = vand.u32 %v372, 4294901760
  %374 = vmatpush.msra.mxu0 %v373
  %v375 = vand.u32 %v43, 4294901760
  %376 = vmatmul.f32.gmra.mxu0 %v375
  %v377 = vpop.f32.mrf.mxu0
  %v378 = vadd.f32 %v348, %v377
  %v379 = vand.u32 %v45, 4294901760
  %380 = vmatmul.f32.gmra.mxu0 %v379
  %v381 = vpop.f32.mrf.mxu0
  %v382 = vadd.f32 %v354, %v381
  %383 = vdwg.mxu0
  %384 = vmatpush.msra.mxu0 0.0
  %385 = vmatpush.msra.mxu0 0.0
  %386 = vmatpush.msra.mxu0 0.0
  %387 = vmatpush.msra.mxu0 0.0
  %388 = vmatpush.msra.mxu0 0.0
  %389 = vmatpush.msra.mxu0 0.0
  %390 = vmatpush.msra.mxu0 0.0
  %391 = vmatpush.msra.mxu0 0.0
  %392 = vmatpush.msra.mxu0 0.0
  %393 = vmatpush.msra.mxu0 0.0
  %394 = vmatpush.msra.mxu0 0.0
  %395 = vmatpush.msra.mxu0 0.0
  %396 = vmatpush.msra.mxu0 0.0
  %397 = vmatpush.msra.mxu0 0.0
  %398 = vmatpush.msra.mxu0 0.0
  %v399 = vand.u32 %v50, 4294901760
  %400 = vmatpush.msra.mxu0 %v399
  %v401 = vand.u32 %v43, 4294901760
  %402 = vmatmul.f32.gmra.mxu0 %v401
  %v403 = vpop.f32.mrf.mxu0
  %v404 = vadd.f32 %v378, %v403
  %v405 = vand.u32 %v45, 4294901760
  %406 = vmatmul.f32.gmra.mxu0 %v405
  %v407 = vpop.f32.mrf.mxu0
  %v408 = vadd.f32 %v382, %v407
  %409 = vdwg.mxu0
  %410 = vmatpush.msra.mxu0 0.0
  %411 = vmatpush.msra.mxu0 0.0
  %412 = vmatpush.msra.mxu0 0.0
  %413 = vmatpush.msra.mxu0 0.0
  %414 = vmatpush.msra.mxu0 0.0
  %415 = vmatpush.msra.mxu0 0.0
  %416 = vmatpush.msra.mxu0 0.0
  %417 = vmatpush.msra.mxu0 0.0
  %418 = vmatpush.msra.mxu0 0.0
  %419 = vmatpush.msra.mxu0 0.0
  %420 = vmatpush.msra.mxu0 0.0
  %421 = vmatpush.msra.mxu0 0.0
  %422 = vmatpush.msra.mxu0 0.0
  %423 = vmatpush.msra.mxu0 0.0
  %424 = vmatpush.msra.mxu0 0.0
  %v425 = vand.u32 %v52, 4294901760
  %426 = vmatpush.msra.mxu0 %v425
  %v427 = vand.u32 %v43, 4294901760
  %v428 = vsub.f32 %v43, %v427
  %v429 = vand.u32 %v428, 4294901760
  %v430 = vsub.f32 %v428, %v429
  %v431 = vand.u32 %v430, 4294901760
  %432 = vmatmul.f32.gmra.mxu0 %v431
  %v433 = vpop.f32.mrf.mxu0
  %v434 = vadd.f32 %v35, %v433
  %v435 = vand.u32 %v45, 4294901760
  %v436 = vsub.f32 %v45, %v435
  %v437 = vand.u32 %v436, 4294901760
  %v438 = vsub.f32 %v436, %v437
  %v439 = vand.u32 %v438, 4294901760
  %440 = vmatmul.f32.gmra.mxu0 %v439
  %v441 = vpop.f32.mrf.mxu0
  %v442 = vadd.f32 %v40, %v441
  %443 = vdwg.mxu0
  %444 = vmatpush.msra.mxu0 0.0
  %445 = vmatpush.msra.mxu0 0.0
  %446 = vmatpush.msra.mxu0 0.0
  %447 = vmatpush.msra.mxu0 0.0
  %448 = vmatpush.msra.mxu0 0.0
  %449 = vmatpush.msra.mxu0 0.0
  %450 = vmatpush.msra.mxu0 0.0
  %451 = vmatpush.msra.mxu0 0.0
  %452 = vmatpush.msra.mxu0 0.0
  %453 = vmatpush.msra.mxu0 0.0
  %454 = vmatpush.msra.mxu0 0.0
  %455 = vmatpush.msra.mxu0 0.0
  %456 = vmatpush.msra.mxu0 0.0
  %457 = vmatpush.msra.mxu0 0.0
  %458 = vmatpush.msra.mxu0 0.0
  %v459 = vand.u32 %v52, 4294901760
  %v460 = vsub.f32 %v52, %v459
  %v461 = vand.u32 %v460, 4294901760
  %v462 = vsub.f32 %v460, %v461
  %v463 = vand.u32 %v462, 4294901760
  %464 = vmatpush.msra.mxu0 %v463
  %v465 = vand.u32 %v43, 4294901760
  %466 = vmatmul.f32.gmra.mxu0 %v465
  %v467 = vpop.f32.mrf.mxu0
  %v468 = vadd.f32 %v434, %v467
  %v469 = vand.u32 %v45, 4294901760
  %470 = vmatmul.f32.gmra.mxu0 %v469
  %v471 = vpop.f32.mrf.mxu0
  %v472 = vadd.f32 %v442, %v471
  %473 = vdwg.mxu0
  %474 = vmatpush.msra.mxu0 0.0
  %475 = vmatpush.msra.mxu0 0.0
  %476 = vmatpush.msra.mxu0 0.0
  %477 = vmatpush.msra.mxu0 0.0
  %478 = vmatpush.msra.mxu0 0.0
  %479 = vmatpush.msra.mxu0 0.0
  %480 = vmatpush.msra.mxu0 0.0
  %481 = vmatpush.msra.mxu0 0.0
  %482 = vmatpush.msra.mxu0 0.0
  %483 = vmatpush.msra.mxu0 0.0
  %484 = vmatpush.msra.mxu0 0.0
  %485 = vmatpush.msra.mxu0 0.0
  %486 = vmatpush.msra.mxu0 0.0
  %487 = vmatpush.msra.mxu0 0.0
  %488 = vmatpush.msra.mxu0 0.0
  %v489 = vand.u32 %v52, 4294901760
  %v490 = vsub.f32 %v52, %v489
  %491 = vmatpush.msra.mxu0 %v490
  %v492 = vand.u32 %v43, 4294901760
  %v493 = vsub.f32 %v43, %v492
  %494 = vmatmul.f32.gmra.mxu0 %v493
  %v495 = vpop.f32.mrf.mxu0
  %v496 = vadd.f32 %v468, %v495
  %v497 = vand.u32 %v45, 4294901760
  %v498 = vsub.f32 %v45, %v497
  %499 = vmatmul.f32.gmra.mxu0 %v498
  %v500 = vpop.f32.mrf.mxu0
  %v501 = vadd.f32 %v472, %v500
  %502 = vdwg.mxu0
  %503 = vmatpush.msra.mxu0 0.0
  %504 = vmatpush.msra.mxu0 0.0
  %505 = vmatpush.msra.mxu0 0.0
  %506 = vmatpush.msra.mxu0 0.0
  %507 = vmatpush.msra.mxu0 0.0
  %508 = vmatpush.msra.mxu0 0.0
  %509 = vmatpush.msra.mxu0 0.0
  %510 = vmatpush.msra.mxu0 0.0
  %511 = vmatpush.msra.mxu0 0.0
  %512 = vmatpush.msra.mxu0 0.0
  %513 = vmatpush.msra.mxu0 0.0
  %514 = vmatpush.msra.mxu0 0.0
  %515 = vmatpush.msra.mxu0 0.0
  %516 = vmatpush.msra.mxu0 0.0
  %517 = vmatpush.msra.mxu0 0.0
  %v518 = vand.u32 %v52, 4294901760
  %519 = vmatpush.msra.mxu0 %v518
  %v520 = vand.u32 %v43, 4294901760
  %v521 = vsub.f32 %v43, %v520
  %v522 = vand.u32 %v521, 4294901760
  %523 = vmatmul.f32.gmra.mxu0 %v522
  %v524 = vpop.f32.mrf.mxu0
  %v525 = vadd.f32 %v496, %v524
  %v526 = vand.u32 %v45, 4294901760
  %v527 = vsub.f32 %v45, %v526
  %v528 = vand.u32 %v527, 4294901760
  %529 = vmatmul.f32.gmra.mxu0 %v528
  %v530 = vpop.f32.mrf.mxu0
  %v531 = vadd.f32 %v501, %v530
  %532 = vdwg.mxu0
  %533 = vmatpush.msra.mxu0 0.0
  %534 = vmatpush.msra.mxu0 0.0
  %535 = vmatpush.msra.mxu0 0.0
  %536 = vmatpush.msra.mxu0 0.0
  %537 = vmatpush.msra.mxu0 0.0
  %538 = vmatpush.msra.mxu0 0.0
  %539 = vmatpush.msra.mxu0 0.0
  %540 = vmatpush.msra.mxu0 0.0
  %541 = vmatpush.msra.mxu0 0.0
  %542 = vmatpush.msra.mxu0 0.0
  %543 = vmatpush.msra.mxu0 0.0
  %544 = vmatpush.msra.mxu0 0.0
  %545 = vmatpush.msra.mxu0 0.0
  %546 = vmatpush.msra.mxu0 0.0
  %547 = vmatpush.msra.mxu0 0.0
  %v548 = vand.u32 %v52, 4294901760
  %v549 = vsub.f32 %v52, %v548
  %v550 = vand.u32 %v549, 4294901760
  %551 = vmatpush.msra.mxu0 %v550
  %v552 = vand.u32 %v43, 4294901760
  %553 = vmatmul.f32.gmra.mxu0 %v552
  %v554 = vpop.f32.mrf.mxu0
  %v555 = vadd.f32 %v525, %v554
  %v556 = vand.u32 %v45, 4294901760
  %557 = vmatmul.f32.gmra.mxu0 %v556
  %v558 = vpop.f32.mrf.mxu0
  %v559 = vadd.f32 %v531, %v558
  %560 = vdwg.mxu0
  %561 = vmatpush.msra.mxu0 0.0
  %562 = vmatpush.msra.mxu0 0.0
  %563 = vmatpush.msra.mxu0 0.0
  %564 = vmatpush.msra.mxu0 0.0
  %565 = vmatpush.msra.mxu0 0.0
  %566 = vmatpush.msra.mxu0 0.0
  %567 = vmatpush.msra.mxu0 0.0
  %568 = vmatpush.msra.mxu0 0.0
  %569 = vmatpush.msra.mxu0 0.0
  %570 = vmatpush.msra.mxu0 0.0
  %571 = vmatpush.msra.mxu0 0.0
  %572 = vmatpush.msra.mxu0 0.0
  %573 = vmatpush.msra.mxu0 0.0
  %574 = vmatpush.msra.mxu0 0.0
  %575 = vmatpush.msra.mxu0 0.0
  %v576 = vand.u32 %v52, 4294901760
  %577 = vmatpush.msra.mxu0 %v576
  %v578 = vand.u32 %v43, 4294901760
  %579 = vmatmul.f32.gmra.mxu0 %v578
  %v580 = vpop.f32.mrf.mxu0
  %v581 = vadd.f32 %v555, %v580
  %v582 = vand.u32 %v45, 4294901760
  %583 = vmatmul.f32.gmra.mxu0 %v582
  %v584 = vpop.f32.mrf.mxu0
  %v585 = vadd.f32 %v559, %v584
  %586 = vdwg.mxu0
  %587 = vmatpush.msra.mxu0 0.0
  %588 = vmatpush.msra.mxu0 0.0
  %589 = vmatpush.msra.mxu0 0.0
  %590 = vmatpush.msra.mxu0 0.0
  %591 = vmatpush.msra.mxu0 0.0
  %592 = vmatpush.msra.mxu0 0.0
  %593 = vmatpush.msra.mxu0 0.0
  %594 = vmatpush.msra.mxu0 0.0
  %595 = vmatpush.msra.mxu0 0.0
  %596 = vmatpush.msra.mxu0 0.0
  %597 = vmatpush.msra.mxu0 0.0
  %598 = vmatpush.msra.mxu0 0.0
  %599 = vmatpush.msra.mxu0 0.0
  %600 = vmatpush.msra.mxu0 0.0
  %601 = vmatpush.msra.mxu0 0.0
  %v602 = vand.u32 %v54, 4294901760
  %603 = vmatpush.msra.mxu0 %v602
  %v604 = vand.u32 %v43, 4294901760
  %v605 = vsub.f32 %v43, %v604
  %v606 = vand.u32 %v605, 4294901760
  %v607 = vsub.f32 %v605, %v606
  %v608 = vand.u32 %v607, 4294901760
  %609 = vmatmul.f32.gmra.mxu0 %v608
  %v610 = vpop.f32.mrf.mxu0
  %v611 = vadd.f32 %v35, %v610
  %v612 = vand.u32 %v45, 4294901760
  %v613 = vsub.f32 %v45, %v612
  %v614 = vand.u32 %v613, 4294901760
  %v615 = vsub.f32 %v613, %v614
  %v616 = vand.u32 %v615, 4294901760
  %617 = vmatmul.f32.gmra.mxu0 %v616
  %v618 = vpop.f32.mrf.mxu0
  %v619 = vadd.f32 %v40, %v618
  %620 = vdwg.mxu0
  %621 = vmatpush.msra.mxu0 0.0
  %622 = vmatpush.msra.mxu0 0.0
  %623 = vmatpush.msra.mxu0 0.0
  %624 = vmatpush.msra.mxu0 0.0
  %625 = vmatpush.msra.mxu0 0.0
  %626 = vmatpush.msra.mxu0 0.0
  %627 = vmatpush.msra.mxu0 0.0
  %628 = vmatpush.msra.mxu0 0.0
  %629 = vmatpush.msra.mxu0 0.0
  %630 = vmatpush.msra.mxu0 0.0
  %631 = vmatpush.msra.mxu0 0.0
  %632 = vmatpush.msra.mxu0 0.0
  %633 = vmatpush.msra.mxu0 0.0
  %634 = vmatpush.msra.mxu0 0.0
  %635 = vmatpush.msra.mxu0 0.0
  %v636 = vand.u32 %v54, 4294901760
  %v637 = vsub.f32 %v54, %v636
  %v638 = vand.u32 %v637, 4294901760
  %v639 = vsub.f32 %v637, %v638
  %v640 = vand.u32 %v639, 4294901760
  %641 = vmatpush.msra.mxu0 %v640
  %v642 = vand.u32 %v43, 4294901760
  %643 = vmatmul.f32.gmra.mxu0 %v642
  %v644 = vpop.f32.mrf.mxu0
  %v645 = vadd.f32 %v611, %v644
  %v646 = vand.u32 %v45, 4294901760
  %647 = vmatmul.f32.gmra.mxu0 %v646
  %v648 = vpop.f32.mrf.mxu0
  %v649 = vadd.f32 %v619, %v648
  %650 = vdwg.mxu0
  %651 = vmatpush.msra.mxu0 0.0
  %652 = vmatpush.msra.mxu0 0.0
  %653 = vmatpush.msra.mxu0 0.0
  %654 = vmatpush.msra.mxu0 0.0
  %655 = vmatpush.msra.mxu0 0.0
  %656 = vmatpush.msra.mxu0 0.0
  %657 = vmatpush.msra.mxu0 0.0
  %658 = vmatpush.msra.mxu0 0.0
  %659 = vmatpush.msra.mxu0 0.0
  %660 = vmatpush.msra.mxu0 0.0
  %661 = vmatpush.msra.mxu0 0.0
  %662 = vmatpush.msra.mxu0 0.0
  %663 = vmatpush.msra.mxu0 0.0
  %664 = vmatpush.msra.mxu0 0.0
  %665 = vmatpush.msra.mxu0 0.0
  %v666 = vand.u32 %v54, 4294901760
  %v667 = vsub.f32 %v54, %v666
  %668 = vmatpush.msra.mxu0 %v667
  %v669 = vand.u32 %v43, 4294901760
  %v670 = vsub.f32 %v43, %v669
  %671 = vmatmul.f32.gmra.mxu0 %v670
  %v672 = vpop.f32.mrf.mxu0
  %v673 = vadd.f32 %v645, %v672
  %v674 = vand.u32 %v45, 4294901760
  %v675 = vsub.f32 %v45, %v674
  %676 = vmatmul.f32.gmra.mxu0 %v675
  %v677 = vpop.f32.mrf.mxu0
  %v678 = vadd.f32 %v649, %v677
  %679 = vdwg.mxu0
  %680 = vmatpush.msra.mxu0 0.0
  %681 = vmatpush.msra.mxu0 0.0
  %682 = vmatpush.msra.mxu0 0.0
  %683 = vmatpush.msra.mxu0 0.0
  %684 = vmatpush.msra.mxu0 0.0
  %685 = vmatpush.msra.mxu0 0.0
  %686 = vmatpush.msra.mxu0 0.0
  %687 = vmatpush.msra.mxu0 0.0
  %688 = vmatpush.msra.mxu0 0.0
  %689 = vmatpush.msra.mxu0 0.0
  %690 = vmatpush.msra.mxu0 0.0
  %691 = vmatpush.msra.mxu0 0.0
  %692 = vmatpush.msra.mxu0 0.0
  %693 = vmatpush.msra.mxu0 0.0
  %694 = vmatpush.msra.mxu0 0.0
  %v695 = vand.u32 %v54, 4294901760
  %696 = vmatpush.msra.mxu0 %v695
  %v697 = vand.u32 %v43, 4294901760
  %v698 = vsub.f32 %v43, %v697
  %v699 = vand.u32 %v698, 4294901760
  %700 = vmatmul.f32.gmra.mxu0 %v699
  %v701 = vpop.f32.mrf.mxu0
  %v702 = vadd.f32 %v673, %v701
  %v703 = vand.u32 %v45, 4294901760
  %v704 = vsub.f32 %v45, %v703
  %v705 = vand.u32 %v704, 4294901760
  %706 = vmatmul.f32.gmra.mxu0 %v705
  %v707 = vpop.f32.mrf.mxu0
  %v708 = vadd.f32 %v678, %v707
  %709 = vdwg.mxu0
  %710 = vmatpush.msra.mxu0 0.0
  %711 = vmatpush.msra.mxu0 0.0
  %712 = vmatpush.msra.mxu0 0.0
  %713 = vmatpush.msra.mxu0 0.0
  %714 = vmatpush.msra.mxu0 0.0
  %715 = vmatpush.msra.mxu0 0.0
  %716 = vmatpush.msra.mxu0 0.0
  %717 = vmatpush.msra.mxu0 0.0
  %718 = vmatpush.msra.mxu0 0.0
  %719 = vmatpush.msra.mxu0 0.0
  %720 = vmatpush.msra.mxu0 0.0
  %721 = vmatpush.msra.mxu0 0.0
  %722 = vmatpush.msra.mxu0 0.0
  %723 = vmatpush.msra.mxu0 0.0
  %724 = vmatpush.msra.mxu0 0.0
  %v725 = vand.u32 %v54, 4294901760
  %v726 = vsub.f32 %v54, %v725
  %v727 = vand.u32 %v726, 4294901760
  %728 = vmatpush.msra.mxu0 %v727
  %v729 = vand.u32 %v43, 4294901760
  %730 = vmatmul.f32.gmra.mxu0 %v729
  %v731 = vpop.f32.mrf.mxu0
  %v732 = vadd.f32 %v702, %v731
  %v733 = vand.u32 %v45, 4294901760
  %734 = vmatmul.f32.gmra.mxu0 %v733
  %v735 = vpop.f32.mrf.mxu0
  %v736 = vadd.f32 %v708, %v735
  %737 = vdwg.mxu0
  %738 = vmatpush.msra.mxu0 0.0
  %739 = vmatpush.msra.mxu0 0.0
  %740 = vmatpush.msra.mxu0 0.0
  %741 = vmatpush.msra.mxu0 0.0
  %742 = vmatpush.msra.mxu0 0.0
  %743 = vmatpush.msra.mxu0 0.0
  %744 = vmatpush.msra.mxu0 0.0
  %745 = vmatpush.msra.mxu0 0.0
  %746 = vmatpush.msra.mxu0 0.0
  %747 = vmatpush.msra.mxu0 0.0
  %748 = vmatpush.msra.mxu0 0.0
  %749 = vmatpush.msra.mxu0 0.0
  %750 = vmatpush.msra.mxu0 0.0
  %751 = vmatpush.msra.mxu0 0.0
  %752 = vmatpush.msra.mxu0 0.0
  %v753 = vand.u32 %v54, 4294901760
  %754 = vmatpush.msra.mxu0 %v753
  %v755 = vand.u32 %v43, 4294901760
  %756 = vmatmul.f32.gmra.mxu0 %v755
  %v757 = vpop.f32.mrf.mxu0
  %v758 = vadd.f32 %v732, %v757
  %v759 = vand.u32 %v45, 4294901760
  %760 = vmatmul.f32.gmra.mxu0 %v759
  %v761 = vpop.f32.mrf.mxu0
  %v762 = vadd.f32 %v736, %v761
  %763 = vdwg.mxu0
  %v764 = vmax.f32 %v227, 0.0
  %v765 = vmax.f32 %v404, 0.0
  %v766 = vmax.f32 %v581, 0.0
  %v767 = vmax.f32 %v758, 0.0
  %v768 = vmax.f32 %v231, 0.0
  %v769 = vmax.f32 %v408, 0.0
  %v770 = vmax.f32 %v585, 0.0
  %v771 = vmax.f32 %v762, 0.0
  %v772 = vlaneseq
  %v773 = vand.u32 %v772, 127
  %v774 = vadd.s32 %v773, 128
  %v775 = vadd.s32 %v773, 256
  %v776 = vadd.s32 %v773, 384
  %v777 = vand.u32 %v773, 255
  %v778 = vand.u32 %v774, 255
  %v779 = vand.u32 %v775, 255
  %v780 = vand.u32 %v776, 255
  %v781 = vand.u32 %v777, 15
  %v782 = vand.u32 %v778, 15
  %v783 = vand.u32 %v779, 15
  %v784 = vand.u32 %v780, 15
  %vm785 = vcmp.ge.s32.totalorder %v777, 16
  %vm786 = vcmp.ge.s32.totalorder %v778, 16
  %vm787 = vcmp.ge.s32.totalorder %v779, 16
  %vm788 = vcmp.ge.s32.totalorder %v780, 16
  %v789 = vsel %vm785, 1, 0
  %v790 = vsel %vm786, 1, 0
  %v791 = vsel %vm787, 1, 0
  %v792 = vsel %vm788, 1, 0
  %v793 = vcvt.s32.f32 %v789
  %v794 = vcvt.s32.f32 %v790
  %v795 = vcvt.s32.f32 %v791
  %v796 = vcvt.s32.f32 %v792
  %vm797 = vcmp.lt.s32.totalorder %v777, 240
  %vm798 = vcmp.lt.s32.totalorder %v778, 240
  %vm799 = vcmp.lt.s32.totalorder %v779, 240
  %vm800 = vcmp.lt.s32.totalorder %v780, 240
  %v801 = vsel %vm797, 1, 0
  %v802 = vsel %vm798, 1, 0
  %v803 = vsel %vm799, 1, 0
  %v804 = vsel %vm800, 1, 0
  %v805 = vcvt.s32.f32 %v801
  %v806 = vcvt.s32.f32 %v802
  %v807 = vcvt.s32.f32 %v803
  %v808 = vcvt.s32.f32 %v804
  %vm809 = vcmp.ne.s32.totalorder %v781, 0
  %vm810 = vcmp.ne.s32.totalorder %v782, 0
  %vm811 = vcmp.ne.s32.totalorder %v783, 0
  %vm812 = vcmp.ne.s32.totalorder %v784, 0
  %v813 = vsel %vm809, 1, 0
  %v814 = vsel %vm810, 1, 0
  %v815 = vsel %vm811, 1, 0
  %v816 = vsel %vm812, 1, 0
  %v817 = vcvt.s32.f32 %v813
  %v818 = vcvt.s32.f32 %v814
  %v819 = vcvt.s32.f32 %v815
  %v820 = vcvt.s32.f32 %v816
  %vm821 = vcmp.ne.s32.totalorder %v781, 15
  %vm822 = vcmp.ne.s32.totalorder %v782, 15
  %vm823 = vcmp.ne.s32.totalorder %v783, 15
  %vm824 = vcmp.ne.s32.totalorder %v784, 15
  %v825 = vsel %vm821, 1, 0
  %v826 = vsel %vm822, 1, 0
  %v827 = vsel %vm823, 1, 0
  %v828 = vsel %vm824, 1, 0
  %v829 = vcvt.s32.f32 %v825
  %v830 = vcvt.s32.f32 %v826
  %v831 = vcvt.s32.f32 %v827
  %v832 = vcvt.s32.f32 %v828
  %v833 = vmul.f32 %v793, %v817
  %v834 = vmul.f32 %v794, %v818
  %v835 = vmul.f32 %v795, %v819
  %v836 = vmul.f32 %v796, %v820
  %v837 = vmul.f32 %v793, %v829
  %v838 = vmul.f32 %v794, %v830
  %v839 = vmul.f32 %v795, %v831
  %v840 = vmul.f32 %v796, %v832
  %v841 = vmul.f32 %v805, %v817
  %v842 = vmul.f32 %v806, %v818
  %v843 = vmul.f32 %v807, %v819
  %v844 = vmul.f32 %v808, %v820
  %v845 = vmul.f32 %v805, %v829
  %v846 = vmul.f32 %v806, %v830
  %v847 = vmul.f32 %v807, %v831
  %v848 = vmul.f32 %v808, %v832
  %849 = vrot.lane.b32.xlu0 %v764, 17
  %v850 = vpop.permute.xlu0 %849
  %851 = vrot.lane.b32.xlu0 %v768, 17
  %v852 = vpop.permute.xlu0 %851
  %853 = vrot.lane.b32.xlu0 %v765, 17
  %v854 = vpop.permute.xlu0 %853
  %855 = vrot.lane.b32.xlu0 %v769, 17
  %v856 = vpop.permute.xlu0 %855
  %857 = vrot.lane.b32.xlu0 %v766, 17
  %v858 = vpop.permute.xlu0 %857
  %859 = vrot.lane.b32.xlu0 %v770, 17
  %v860 = vpop.permute.xlu0 %859
  %861 = vrot.lane.b32.xlu0 %v767, 17
  %v862 = vpop.permute.xlu0 %861
  %863 = vrot.lane.b32.xlu0 %v771, 17
  %v864 = vpop.permute.xlu0 %863
  %vm865 = vcmp.lt.s32.totalorder %v773, 17
  %v866 = vsel %vm865, %v858, %v862
  %v867 = vsel %vm865, %v860, %v864
  %v868 = vsel %vm865, %v854, %v858
  %v869 = vsel %vm865, %v856, %v860
  %v870 = vsel %vm865, %v850, %v854
  %v871 = vsel %vm865, %v852, %v856
  %v872 = vsel %vm865, %v862, %v850
  %v873 = vsel %vm865, %v864, %v852
  %874 = vset.pattern.permute.xlu0 4
  %875 = vperm.xlu0 %874, %v29
  %v876 = vpop.permute.xlu0 %875
  %878 = vset.pattern.permute.xlu0 4
  %879 = vperm.xlu0 %878, %v30
  %v880 = vpop.permute.xlu0 %879
  %v882 = vmul.f32 %v872, %v876
  %v883 = vmul.f32 %v870, %v876
  %v884 = vmul.f32 %v868, %v876
  %v885 = vmul.f32 %v866, %v876
  %v886 = vmul.f32 %v873, %v880
  %v887 = vmul.f32 %v871, %v880
  %v888 = vmul.f32 %v869, %v880
  %v889 = vmul.f32 %v867, %v880
  %v890 = vmul.f32 %v882, %v833
  %v891 = vmul.f32 %v883, %v834
  %v892 = vmul.f32 %v884, %v835
  %v893 = vmul.f32 %v885, %v836
  %v894 = vmul.f32 %v886, %v833
  %v895 = vmul.f32 %v887, %v834
  %v896 = vmul.f32 %v888, %v835
  %v897 = vmul.f32 %v889, %v836
  %898 = vrot.lane.b32.xlu0 %v764, 16
  %v899 = vpop.permute.xlu0 %898
  %900 = vrot.lane.b32.xlu0 %v768, 16
  %v901 = vpop.permute.xlu0 %900
  %902 = vrot.lane.b32.xlu0 %v765, 16
  %v903 = vpop.permute.xlu0 %902
  %904 = vrot.lane.b32.xlu0 %v769, 16
  %v905 = vpop.permute.xlu0 %904
  %906 = vrot.lane.b32.xlu0 %v766, 16
  %v907 = vpop.permute.xlu0 %906
  %908 = vrot.lane.b32.xlu0 %v770, 16
  %v909 = vpop.permute.xlu0 %908
  %910 = vrot.lane.b32.xlu0 %v767, 16
  %v911 = vpop.permute.xlu0 %910
  %912 = vrot.lane.b32.xlu0 %v771, 16
  %v913 = vpop.permute.xlu0 %912
  %vm914 = vcmp.lt.s32.totalorder %v773, 16
  %v915 = vsel %vm914, %v907, %v911
  %v916 = vsel %vm914, %v909, %v913
  %v917 = vsel %vm914, %v903, %v907
  %v918 = vsel %vm914, %v905, %v909
  %v919 = vsel %vm914, %v899, %v903
  %v920 = vsel %vm914, %v901, %v905
  %v921 = vsel %vm914, %v911, %v899
  %v922 = vsel %vm914, %v913, %v901
  %923 = vset.pattern.permute.xlu0 5
  %924 = vperm.xlu0 %923, %v29
  %v925 = vpop.permute.xlu0 %924
  %927 = vset.pattern.permute.xlu0 5
  %928 = vperm.xlu0 %927, %v30
  %v929 = vpop.permute.xlu0 %928
  %v931 = vmul.f32 %v921, %v925
  %v932 = vmul.f32 %v919, %v925
  %v933 = vmul.f32 %v917, %v925
  %v934 = vmul.f32 %v915, %v925
  %v935 = vmul.f32 %v922, %v929
  %v936 = vmul.f32 %v920, %v929
  %v937 = vmul.f32 %v918, %v929
  %v938 = vmul.f32 %v916, %v929
  %v939 = vmul.f32 %v931, %v793
  %v940 = vmul.f32 %v932, %v794
  %v941 = vmul.f32 %v933, %v795
  %v942 = vmul.f32 %v934, %v796
  %v943 = vmul.f32 %v935, %v793
  %v944 = vmul.f32 %v936, %v794
  %v945 = vmul.f32 %v937, %v795
  %v946 = vmul.f32 %v938, %v796
  %v947 = vadd.f32 %v890, %v939
  %v948 = vadd.f32 %v891, %v940
  %v949 = vadd.f32 %v892, %v941
  %v950 = vadd.f32 %v893, %v942
  %v951 = vadd.f32 %v894, %v943
  %v952 = vadd.f32 %v895, %v944
  %v953 = vadd.f32 %v896, %v945
  %v954 = vadd.f32 %v897, %v946
  %955 = vrot.lane.b32.xlu0 %v764, 15
  %v956 = vpop.permute.xlu0 %955
  %957 = vrot.lane.b32.xlu0 %v768, 15
  %v958 = vpop.permute.xlu0 %957
  %959 = vrot.lane.b32.xlu0 %v765, 15
  %v960 = vpop.permute.xlu0 %959
  %961 = vrot.lane.b32.xlu0 %v769, 15
  %v962 = vpop.permute.xlu0 %961
  %963 = vrot.lane.b32.xlu0 %v766, 15
  %v964 = vpop.permute.xlu0 %963
  %965 = vrot.lane.b32.xlu0 %v770, 15
  %v966 = vpop.permute.xlu0 %965
  %967 = vrot.lane.b32.xlu0 %v767, 15
  %v968 = vpop.permute.xlu0 %967
  %969 = vrot.lane.b32.xlu0 %v771, 15
  %v970 = vpop.permute.xlu0 %969
  %vm971 = vcmp.lt.s32.totalorder %v773, 15
  %v972 = vsel %vm971, %v964, %v968
  %v973 = vsel %vm971, %v966, %v970
  %v974 = vsel %vm971, %v960, %v964
  %v975 = vsel %vm971, %v962, %v966
  %v976 = vsel %vm971, %v956, %v960
  %v977 = vsel %vm971, %v958, %v962
  %v978 = vsel %vm971, %v968, %v956
  %v979 = vsel %vm971, %v970, %v958
  %980 = vset.pattern.permute.xlu0 6
  %981 = vperm.xlu0 %980, %v29
  %v982 = vpop.permute.xlu0 %981
  %984 = vset.pattern.permute.xlu0 6
  %985 = vperm.xlu0 %984, %v30
  %v986 = vpop.permute.xlu0 %985
  %v988 = vmul.f32 %v978, %v982
  %v989 = vmul.f32 %v976, %v982
  %v990 = vmul.f32 %v974, %v982
  %v991 = vmul.f32 %v972, %v982
  %v992 = vmul.f32 %v979, %v986
  %v993 = vmul.f32 %v977, %v986
  %v994 = vmul.f32 %v975, %v986
  %v995 = vmul.f32 %v973, %v986
  %v996 = vmul.f32 %v988, %v837
  %v997 = vmul.f32 %v989, %v838
  %v998 = vmul.f32 %v990, %v839
  %v999 = vmul.f32 %v991, %v840
  %v1000 = vmul.f32 %v992, %v837
  %v1001 = vmul.f32 %v993, %v838
  %v1002 = vmul.f32 %v994, %v839
  %v1003 = vmul.f32 %v995, %v840
  %v1004 = vadd.f32 %v947, %v996
  %v1005 = vadd.f32 %v948, %v997
  %v1006 = vadd.f32 %v949, %v998
  %v1007 = vadd.f32 %v950, %v999
  %v1008 = vadd.f32 %v951, %v1000
  %v1009 = vadd.f32 %v952, %v1001
  %v1010 = vadd.f32 %v953, %v1002
  %v1011 = vadd.f32 %v954, %v1003
  %1012 = vrot.lane.b32.xlu0 %v764, 1
  %v1013 = vpop.permute.xlu0 %1012
  %1014 = vrot.lane.b32.xlu0 %v768, 1
  %v1015 = vpop.permute.xlu0 %1014
  %1016 = vrot.lane.b32.xlu0 %v765, 1
  %v1017 = vpop.permute.xlu0 %1016
  %1018 = vrot.lane.b32.xlu0 %v769, 1
  %v1019 = vpop.permute.xlu0 %1018
  %1020 = vrot.lane.b32.xlu0 %v766, 1
  %v1021 = vpop.permute.xlu0 %1020
  %1022 = vrot.lane.b32.xlu0 %v770, 1
  %v1023 = vpop.permute.xlu0 %1022
  %1024 = vrot.lane.b32.xlu0 %v767, 1
  %v1025 = vpop.permute.xlu0 %1024
  %1026 = vrot.lane.b32.xlu0 %v771, 1
  %v1027 = vpop.permute.xlu0 %1026
  %vm1028 = vcmp.lt.s32.totalorder %v773, 1
  %v1029 = vsel %vm1028, %v1021, %v1025
  %v1030 = vsel %vm1028, %v1023, %v1027
  %v1031 = vsel %vm1028, %v1017, %v1021
  %v1032 = vsel %vm1028, %v1019, %v1023
  %v1033 = vsel %vm1028, %v1013, %v1017
  %v1034 = vsel %vm1028, %v1015, %v1019
  %v1035 = vsel %vm1028, %v1025, %v1013
  %v1036 = vsel %vm1028, %v1027, %v1015
  %1037 = vset.pattern.permute.xlu0 7
  %1038 = vperm.xlu0 %1037, %v29
  %v1039 = vpop.permute.xlu0 %1038
  %1041 = vset.pattern.permute.xlu0 7
  %1042 = vperm.xlu0 %1041, %v30
  %v1043 = vpop.permute.xlu0 %1042
  %v1045 = vmul.f32 %v1035, %v1039
  %v1046 = vmul.f32 %v1033, %v1039
  %v1047 = vmul.f32 %v1031, %v1039
  %v1048 = vmul.f32 %v1029, %v1039
  %v1049 = vmul.f32 %v1036, %v1043
  %v1050 = vmul.f32 %v1034, %v1043
  %v1051 = vmul.f32 %v1032, %v1043
  %v1052 = vmul.f32 %v1030, %v1043
  %v1053 = vmul.f32 %v1045, %v817
  %v1054 = vmul.f32 %v1046, %v818
  %v1055 = vmul.f32 %v1047, %v819
  %v1056 = vmul.f32 %v1048, %v820
  %v1057 = vmul.f32 %v1049, %v817
  %v1058 = vmul.f32 %v1050, %v818
  %v1059 = vmul.f32 %v1051, %v819
  %v1060 = vmul.f32 %v1052, %v820
  %v1061 = vadd.f32 %v1004, %v1053
  %v1062 = vadd.f32 %v1005, %v1054
  %v1063 = vadd.f32 %v1006, %v1055
  %v1064 = vadd.f32 %v1007, %v1056
  %v1065 = vadd.f32 %v1008, %v1057
  %v1066 = vadd.f32 %v1009, %v1058
  %v1067 = vadd.f32 %v1010, %v1059
  %v1068 = vadd.f32 %v1011, %v1060
  %1069 = vset.pattern.permute.xlu0 8
  %1070 = vperm.xlu0 %1069, %v29
  %v1071 = vpop.permute.xlu0 %1070
  %1073 = vset.pattern.permute.xlu0 8
  %1074 = vperm.xlu0 %1073, %v30
  %v1075 = vpop.permute.xlu0 %1074
  %v1077 = vmul.f32 %v764, %v1071
  %v1078 = vmul.f32 %v765, %v1071
  %v1079 = vmul.f32 %v766, %v1071
  %v1080 = vmul.f32 %v767, %v1071
  %v1081 = vmul.f32 %v768, %v1075
  %v1082 = vmul.f32 %v769, %v1075
  %v1083 = vmul.f32 %v770, %v1075
  %v1084 = vmul.f32 %v771, %v1075
  %v1085 = vadd.f32 %v1061, %v1077
  %v1086 = vadd.f32 %v1062, %v1078
  %v1087 = vadd.f32 %v1063, %v1079
  %v1088 = vadd.f32 %v1064, %v1080
  %v1089 = vadd.f32 %v1065, %v1081
  %v1090 = vadd.f32 %v1066, %v1082
  %v1091 = vadd.f32 %v1067, %v1083
  %v1092 = vadd.f32 %v1068, %v1084
  %1093 = vrot.lane.b32.xlu0 %v764, 127
  %v1094 = vpop.permute.xlu0 %1093
  %1095 = vrot.lane.b32.xlu0 %v768, 127
  %v1096 = vpop.permute.xlu0 %1095
  %1097 = vrot.lane.b32.xlu0 %v765, 127
  %v1098 = vpop.permute.xlu0 %1097
  %1099 = vrot.lane.b32.xlu0 %v769, 127
  %v1100 = vpop.permute.xlu0 %1099
  %1101 = vrot.lane.b32.xlu0 %v766, 127
  %v1102 = vpop.permute.xlu0 %1101
  %1103 = vrot.lane.b32.xlu0 %v770, 127
  %v1104 = vpop.permute.xlu0 %1103
  %1105 = vrot.lane.b32.xlu0 %v767, 127
  %v1106 = vpop.permute.xlu0 %1105
  %1107 = vrot.lane.b32.xlu0 %v771, 127
  %v1108 = vpop.permute.xlu0 %1107
  %vm1109 = vcmp.lt.s32.totalorder %v773, 127
  %v1110 = vsel %vm1109, %v1102, %v1106
  %v1111 = vsel %vm1109, %v1104, %v1108
  %v1112 = vsel %vm1109, %v1098, %v1102
  %v1113 = vsel %vm1109, %v1100, %v1104
  %v1114 = vsel %vm1109, %v1094, %v1098
  %v1115 = vsel %vm1109, %v1096, %v1100
  %v1116 = vsel %vm1109, %v1106, %v1094
  %v1117 = vsel %vm1109, %v1108, %v1096
  %1118 = vset.pattern.permute.xlu0 9
  %1119 = vperm.xlu0 %1118, %v29
  %v1120 = vpop.permute.xlu0 %1119
  %1122 = vset.pattern.permute.xlu0 9
  %1123 = vperm.xlu0 %1122, %v30
  %v1124 = vpop.permute.xlu0 %1123
  %v1126 = vmul.f32 %v1114, %v1120
  %v1127 = vmul.f32 %v1112, %v1120
  %v1128 = vmul.f32 %v1110, %v1120
  %v1129 = vmul.f32 %v1116, %v1120
  %v1130 = vmul.f32 %v1115, %v1124
  %v1131 = vmul.f32 %v1113, %v1124
  %v1132 = vmul.f32 %v1111, %v1124
  %v1133 = vmul.f32 %v1117, %v1124
  %v1134 = vmul.f32 %v1126, %v829
  %v1135 = vmul.f32 %v1127, %v830
  %v1136 = vmul.f32 %v1128, %v831
  %v1137 = vmul.f32 %v1129, %v832
  %v1138 = vmul.f32 %v1130, %v829
  %v1139 = vmul.f32 %v1131, %v830
  %v1140 = vmul.f32 %v1132, %v831
  %v1141 = vmul.f32 %v1133, %v832
  %v1142 = vadd.f32 %v1085, %v1134
  %v1143 = vadd.f32 %v1086, %v1135
  %v1144 = vadd.f32 %v1087, %v1136
  %v1145 = vadd.f32 %v1088, %v1137
  %v1146 = vadd.f32 %v1089, %v1138
  %v1147 = vadd.f32 %v1090, %v1139
  %v1148 = vadd.f32 %v1091, %v1140
  %v1149 = vadd.f32 %v1092, %v1141
  %1150 = vrot.lane.b32.xlu0 %v764, 113
  %v1151 = vpop.permute.xlu0 %1150
  %1152 = vrot.lane.b32.xlu0 %v768, 113
  %v1153 = vpop.permute.xlu0 %1152
  %1154 = vrot.lane.b32.xlu0 %v765, 113
  %v1155 = vpop.permute.xlu0 %1154
  %1156 = vrot.lane.b32.xlu0 %v769, 113
  %v1157 = vpop.permute.xlu0 %1156
  %1158 = vrot.lane.b32.xlu0 %v766, 113
  %v1159 = vpop.permute.xlu0 %1158
  %1160 = vrot.lane.b32.xlu0 %v770, 113
  %v1161 = vpop.permute.xlu0 %1160
  %1162 = vrot.lane.b32.xlu0 %v767, 113
  %v1163 = vpop.permute.xlu0 %1162
  %1164 = vrot.lane.b32.xlu0 %v771, 113
  %v1165 = vpop.permute.xlu0 %1164
  %vm1166 = vcmp.lt.s32.totalorder %v773, 113
  %v1167 = vsel %vm1166, %v1159, %v1163
  %v1168 = vsel %vm1166, %v1161, %v1165
  %v1169 = vsel %vm1166, %v1155, %v1159
  %v1170 = vsel %vm1166, %v1157, %v1161
  %v1171 = vsel %vm1166, %v1151, %v1155
  %v1172 = vsel %vm1166, %v1153, %v1157
  %v1173 = vsel %vm1166, %v1163, %v1151
  %v1174 = vsel %vm1166, %v1165, %v1153
  %1175 = vset.pattern.permute.xlu0 10
  %1176 = vperm.xlu0 %1175, %v29
  %v1177 = vpop.permute.xlu0 %1176
  %1179 = vset.pattern.permute.xlu0 10
  %1180 = vperm.xlu0 %1179, %v30
  %v1181 = vpop.permute.xlu0 %1180
  %v1183 = vmul.f32 %v1171, %v1177
  %v1184 = vmul.f32 %v1169, %v1177
  %v1185 = vmul.f32 %v1167, %v1177
  %v1186 = vmul.f32 %v1173, %v1177
  %v1187 = vmul.f32 %v1172, %v1181
  %v1188 = vmul.f32 %v1170, %v1181
  %v1189 = vmul.f32 %v1168, %v1181
  %v1190 = vmul.f32 %v1174, %v1181
  %v1191 = vmul.f32 %v1183, %v841
  %v1192 = vmul.f32 %v1184, %v842
  %v1193 = vmul.f32 %v1185, %v843
  %v1194 = vmul.f32 %v1186, %v844
  %v1195 = vmul.f32 %v1187, %v841
  %v1196 = vmul.f32 %v1188, %v842
  %v1197 = vmul.f32 %v1189, %v843
  %v1198 = vmul.f32 %v1190, %v844
  %v1199 = vadd.f32 %v1142, %v1191
  %v1200 = vadd.f32 %v1143, %v1192
  %v1201 = vadd.f32 %v1144, %v1193
  %v1202 = vadd.f32 %v1145, %v1194
  %v1203 = vadd.f32 %v1146, %v1195
  %v1204 = vadd.f32 %v1147, %v1196
  %v1205 = vadd.f32 %v1148, %v1197
  %v1206 = vadd.f32 %v1149, %v1198
  %1207 = vrot.lane.b32.xlu0 %v764, 112
  %v1208 = vpop.permute.xlu0 %1207
  %1209 = vrot.lane.b32.xlu0 %v768, 112
  %v1210 = vpop.permute.xlu0 %1209
  %1211 = vrot.lane.b32.xlu0 %v765, 112
  %v1212 = vpop.permute.xlu0 %1211
  %1213 = vrot.lane.b32.xlu0 %v769, 112
  %v1214 = vpop.permute.xlu0 %1213
  %1215 = vrot.lane.b32.xlu0 %v766, 112
  %v1216 = vpop.permute.xlu0 %1215
  %1217 = vrot.lane.b32.xlu0 %v770, 112
  %v1218 = vpop.permute.xlu0 %1217
  %1219 = vrot.lane.b32.xlu0 %v767, 112
  %v1220 = vpop.permute.xlu0 %1219
  %1221 = vrot.lane.b32.xlu0 %v771, 112
  %v1222 = vpop.permute.xlu0 %1221
  %vm1223 = vcmp.lt.s32.totalorder %v773, 112
  %v1224 = vsel %vm1223, %v1216, %v1220
  %v1225 = vsel %vm1223, %v1218, %v1222
  %v1226 = vsel %vm1223, %v1212, %v1216
  %v1227 = vsel %vm1223, %v1214, %v1218
  %v1228 = vsel %vm1223, %v1208, %v1212
  %v1229 = vsel %vm1223, %v1210, %v1214
  %v1230 = vsel %vm1223, %v1220, %v1208
  %v1231 = vsel %vm1223, %v1222, %v1210
  %1232 = vset.pattern.permute.xlu0 11
  %1233 = vperm.xlu0 %1232, %v29
  %v1234 = vpop.permute.xlu0 %1233
  %1236 = vset.pattern.permute.xlu0 11
  %1237 = vperm.xlu0 %1236, %v30
  %v1238 = vpop.permute.xlu0 %1237
  %v1240 = vmul.f32 %v1228, %v1234
  %v1241 = vmul.f32 %v1226, %v1234
  %v1242 = vmul.f32 %v1224, %v1234
  %v1243 = vmul.f32 %v1230, %v1234
  %v1244 = vmul.f32 %v1229, %v1238
  %v1245 = vmul.f32 %v1227, %v1238
  %v1246 = vmul.f32 %v1225, %v1238
  %v1247 = vmul.f32 %v1231, %v1238
  %v1248 = vmul.f32 %v1240, %v805
  %v1249 = vmul.f32 %v1241, %v806
  %v1250 = vmul.f32 %v1242, %v807
  %v1251 = vmul.f32 %v1243, %v808
  %v1252 = vmul.f32 %v1244, %v805
  %v1253 = vmul.f32 %v1245, %v806
  %v1254 = vmul.f32 %v1246, %v807
  %v1255 = vmul.f32 %v1247, %v808
  %v1256 = vadd.f32 %v1199, %v1248
  %v1257 = vadd.f32 %v1200, %v1249
  %v1258 = vadd.f32 %v1201, %v1250
  %v1259 = vadd.f32 %v1202, %v1251
  %v1260 = vadd.f32 %v1203, %v1252
  %v1261 = vadd.f32 %v1204, %v1253
  %v1262 = vadd.f32 %v1205, %v1254
  %v1263 = vadd.f32 %v1206, %v1255
  %1264 = vrot.lane.b32.xlu0 %v764, 111
  %v1265 = vpop.permute.xlu0 %1264
  %1266 = vrot.lane.b32.xlu0 %v768, 111
  %v1267 = vpop.permute.xlu0 %1266
  %1268 = vrot.lane.b32.xlu0 %v765, 111
  %v1269 = vpop.permute.xlu0 %1268
  %1270 = vrot.lane.b32.xlu0 %v769, 111
  %v1271 = vpop.permute.xlu0 %1270
  %1272 = vrot.lane.b32.xlu0 %v766, 111
  %v1273 = vpop.permute.xlu0 %1272
  %1274 = vrot.lane.b32.xlu0 %v770, 111
  %v1275 = vpop.permute.xlu0 %1274
  %1276 = vrot.lane.b32.xlu0 %v767, 111
  %v1277 = vpop.permute.xlu0 %1276
  %1278 = vrot.lane.b32.xlu0 %v771, 111
  %v1279 = vpop.permute.xlu0 %1278
  %vm1280 = vcmp.lt.s32.totalorder %v773, 111
  %v1281 = vsel %vm1280, %v1273, %v1277
  %v1282 = vsel %vm1280, %v1275, %v1279
  %v1283 = vsel %vm1280, %v1269, %v1273
  %v1284 = vsel %vm1280, %v1271, %v1275
  %v1285 = vsel %vm1280, %v1265, %v1269
  %v1286 = vsel %vm1280, %v1267, %v1271
  %v1287 = vsel %vm1280, %v1277, %v1265
  %v1288 = vsel %vm1280, %v1279, %v1267
  %1289 = vset.pattern.permute.xlu0 12
  %1290 = vperm.xlu0 %1289, %v29
  %v1291 = vpop.permute.xlu0 %1290
  %1293 = vset.pattern.permute.xlu0 12
  %1294 = vperm.xlu0 %1293, %v30
  %v1295 = vpop.permute.xlu0 %1294
  %v1297 = vmul.f32 %v1285, %v1291
  %v1298 = vmul.f32 %v1283, %v1291
  %v1299 = vmul.f32 %v1281, %v1291
  %v1300 = vmul.f32 %v1287, %v1291
  %v1301 = vmul.f32 %v1286, %v1295
  %v1302 = vmul.f32 %v1284, %v1295
  %v1303 = vmul.f32 %v1282, %v1295
  %v1304 = vmul.f32 %v1288, %v1295
  %v1305 = vmul.f32 %v1297, %v845
  %v1306 = vmul.f32 %v1298, %v846
  %v1307 = vmul.f32 %v1299, %v847
  %v1308 = vmul.f32 %v1300, %v848
  %v1309 = vmul.f32 %v1301, %v845
  %v1310 = vmul.f32 %v1302, %v846
  %v1311 = vmul.f32 %v1303, %v847
  %v1312 = vmul.f32 %v1304, %v848
  %v1313 = vadd.f32 %v1256, %v1305
  %v1314 = vadd.f32 %v1257, %v1306
  %v1315 = vadd.f32 %v1258, %v1307
  %v1316 = vadd.f32 %v1259, %v1308
  %v1317 = vadd.f32 %v1260, %v1309
  %v1318 = vadd.f32 %v1261, %v1310
  %v1319 = vadd.f32 %v1262, %v1311
  %v1320 = vadd.f32 %v1263, %v1312
  %1321 = vset.pattern.permute.xlu0 14
  %1322 = vperm.xlu0 %1321, %v29
  %v1323 = vpop.permute.xlu0 %1322
  %1325 = vset.pattern.permute.xlu0 14
  %1326 = vperm.xlu0 %1325, %v30
  %v1327 = vpop.permute.xlu0 %1326
  %v1329 = vadd.f32 %v1313, %v1323
  %v1330 = vadd.f32 %v1314, %v1323
  %v1331 = vadd.f32 %v1315, %v1323
  %v1332 = vadd.f32 %v1316, %v1323
  %v1333 = vadd.f32 %v1317, %v1327
  %v1334 = vadd.f32 %v1318, %v1327
  %v1335 = vadd.f32 %v1319, %v1327
  %v1336 = vadd.f32 %v1320, %v1327
  %v1337 = vmax.f32 %v1329, 0.0
  %v1338 = vmax.f32 %v1330, 0.0
  %v1339 = vmax.f32 %v1331, 0.0
  %v1340 = vmax.f32 %v1332, 0.0
  %v1341 = vmax.f32 %v1333, 0.0
  %v1342 = vmax.f32 %v1334, 0.0
  %v1343 = vmax.f32 %v1335, 0.0
  %v1344 = vmax.f32 %v1336, 0.0
  %1346 = vset.pattern.permute.xlu0 16
  %1347 = vperm.xlu0 %1346, %v31
  %v1348 = vpop.permute.xlu0 %1347
  %vm1350 = vcmask 130048
  %v1351 = vsel %vm1350, %v31, 0
  %1353 = vmatpush.msra.mxu0 0.0
  %1354 = vmatpush.msra.mxu0 0.0
  %1355 = vmatpush.msra.mxu0 0.0
  %1356 = vmatpush.msra.mxu0 0.0
  %1357 = vmatpush.msra.mxu0 0.0
  %1358 = vmatpush.msra.mxu0 0.0
  %1359 = vmatpush.msra.mxu0 0.0
  %1360 = vmatpush.msra.mxu0 0.0
  %1361 = vmatpush.msra.mxu0 0.0
  %1362 = vmatpush.msra.mxu0 0.0
  %1363 = vmatpush.msra.mxu0 0.0
  %1364 = vmatpush.msra.mxu0 0.0
  %1365 = vmatpush.msra.mxu0 0.0
  %1366 = vmatpush.msra.mxu0 0.0
  %v1367 = vand.u32 %v1341, 4294901760
  %1368 = vmatpush.msra.mxu0 %v1367
  %v1369 = vand.u32 %v1337, 4294901760
  %1370 = vmatpush.msra.mxu0 %v1369
  %v1371 = vand.u32 %v1351, 4294901760
  %v1372 = vsub.f32 %v1351, %v1371
  %v1373 = vand.u32 %v1372, 4294901760
  %v1374 = vsub.f32 %v1372, %v1373
  %v1375 = vand.u32 %v1374, 4294901760
  %1376 = vmatmul.f32.gmra.mxu0 %v1375
  %v1377 = vpop.f32.mrf.mxu0
  %v1378 = vadd.f32 %v1348, %v1377
  %1379 = vdwg.mxu0
  %1380 = vmatpush.msra.mxu0 0.0
  %1381 = vmatpush.msra.mxu0 0.0
  %1382 = vmatpush.msra.mxu0 0.0
  %1383 = vmatpush.msra.mxu0 0.0
  %1384 = vmatpush.msra.mxu0 0.0
  %1385 = vmatpush.msra.mxu0 0.0
  %1386 = vmatpush.msra.mxu0 0.0
  %1387 = vmatpush.msra.mxu0 0.0
  %1388 = vmatpush.msra.mxu0 0.0
  %1389 = vmatpush.msra.mxu0 0.0
  %1390 = vmatpush.msra.mxu0 0.0
  %1391 = vmatpush.msra.mxu0 0.0
  %1392 = vmatpush.msra.mxu0 0.0
  %1393 = vmatpush.msra.mxu0 0.0
  %v1394 = vand.u32 %v1341, 4294901760
  %v1395 = vsub.f32 %v1341, %v1394
  %v1396 = vand.u32 %v1395, 4294901760
  %v1397 = vsub.f32 %v1395, %v1396
  %v1398 = vand.u32 %v1397, 4294901760
  %1399 = vmatpush.msra.mxu0 %v1398
  %v1400 = vand.u32 %v1337, 4294901760
  %v1401 = vsub.f32 %v1337, %v1400
  %v1402 = vand.u32 %v1401, 4294901760
  %v1403 = vsub.f32 %v1401, %v1402
  %v1404 = vand.u32 %v1403, 4294901760
  %1405 = vmatpush.msra.mxu0 %v1404
  %v1406 = vand.u32 %v1351, 4294901760
  %1407 = vmatmul.f32.gmra.mxu0 %v1406
  %v1408 = vpop.f32.mrf.mxu0
  %v1409 = vadd.f32 %v1378, %v1408
  %1410 = vdwg.mxu0
  %1411 = vmatpush.msra.mxu0 0.0
  %1412 = vmatpush.msra.mxu0 0.0
  %1413 = vmatpush.msra.mxu0 0.0
  %1414 = vmatpush.msra.mxu0 0.0
  %1415 = vmatpush.msra.mxu0 0.0
  %1416 = vmatpush.msra.mxu0 0.0
  %1417 = vmatpush.msra.mxu0 0.0
  %1418 = vmatpush.msra.mxu0 0.0
  %1419 = vmatpush.msra.mxu0 0.0
  %1420 = vmatpush.msra.mxu0 0.0
  %1421 = vmatpush.msra.mxu0 0.0
  %1422 = vmatpush.msra.mxu0 0.0
  %1423 = vmatpush.msra.mxu0 0.0
  %1424 = vmatpush.msra.mxu0 0.0
  %v1425 = vand.u32 %v1341, 4294901760
  %v1426 = vsub.f32 %v1341, %v1425
  %1427 = vmatpush.msra.mxu0 %v1426
  %v1428 = vand.u32 %v1337, 4294901760
  %v1429 = vsub.f32 %v1337, %v1428
  %1430 = vmatpush.msra.mxu0 %v1429
  %v1431 = vand.u32 %v1351, 4294901760
  %v1432 = vsub.f32 %v1351, %v1431
  %1433 = vmatmul.f32.gmra.mxu0 %v1432
  %v1434 = vpop.f32.mrf.mxu0
  %v1435 = vadd.f32 %v1409, %v1434
  %1436 = vdwg.mxu0
  %1437 = vmatpush.msra.mxu0 0.0
  %1438 = vmatpush.msra.mxu0 0.0
  %1439 = vmatpush.msra.mxu0 0.0
  %1440 = vmatpush.msra.mxu0 0.0
  %1441 = vmatpush.msra.mxu0 0.0
  %1442 = vmatpush.msra.mxu0 0.0
  %1443 = vmatpush.msra.mxu0 0.0
  %1444 = vmatpush.msra.mxu0 0.0
  %1445 = vmatpush.msra.mxu0 0.0
  %1446 = vmatpush.msra.mxu0 0.0
  %1447 = vmatpush.msra.mxu0 0.0
  %1448 = vmatpush.msra.mxu0 0.0
  %1449 = vmatpush.msra.mxu0 0.0
  %1450 = vmatpush.msra.mxu0 0.0
  %v1451 = vand.u32 %v1341, 4294901760
  %1452 = vmatpush.msra.mxu0 %v1451
  %v1453 = vand.u32 %v1337, 4294901760
  %1454 = vmatpush.msra.mxu0 %v1453
  %v1455 = vand.u32 %v1351, 4294901760
  %v1456 = vsub.f32 %v1351, %v1455
  %v1457 = vand.u32 %v1456, 4294901760
  %1458 = vmatmul.f32.gmra.mxu0 %v1457
  %v1459 = vpop.f32.mrf.mxu0
  %v1460 = vadd.f32 %v1435, %v1459
  %1461 = vdwg.mxu0
  %1462 = vmatpush.msra.mxu0 0.0
  %1463 = vmatpush.msra.mxu0 0.0
  %1464 = vmatpush.msra.mxu0 0.0
  %1465 = vmatpush.msra.mxu0 0.0
  %1466 = vmatpush.msra.mxu0 0.0
  %1467 = vmatpush.msra.mxu0 0.0
  %1468 = vmatpush.msra.mxu0 0.0
  %1469 = vmatpush.msra.mxu0 0.0
  %1470 = vmatpush.msra.mxu0 0.0
  %1471 = vmatpush.msra.mxu0 0.0
  %1472 = vmatpush.msra.mxu0 0.0
  %1473 = vmatpush.msra.mxu0 0.0
  %1474 = vmatpush.msra.mxu0 0.0
  %1475 = vmatpush.msra.mxu0 0.0
  %v1476 = vand.u32 %v1341, 4294901760
  %v1477 = vsub.f32 %v1341, %v1476
  %v1478 = vand.u32 %v1477, 4294901760
  %1479 = vmatpush.msra.mxu0 %v1478
  %v1480 = vand.u32 %v1337, 4294901760
  %v1481 = vsub.f32 %v1337, %v1480
  %v1482 = vand.u32 %v1481, 4294901760
  %1483 = vmatpush.msra.mxu0 %v1482
  %v1484 = vand.u32 %v1351, 4294901760
  %1485 = vmatmul.f32.gmra.mxu0 %v1484
  %v1486 = vpop.f32.mrf.mxu0
  %v1487 = vadd.f32 %v1460, %v1486
  %1488 = vdwg.mxu0
  %1489 = vmatpush.msra.mxu0 0.0
  %1490 = vmatpush.msra.mxu0 0.0
  %1491 = vmatpush.msra.mxu0 0.0
  %1492 = vmatpush.msra.mxu0 0.0
  %1493 = vmatpush.msra.mxu0 0.0
  %1494 = vmatpush.msra.mxu0 0.0
  %1495 = vmatpush.msra.mxu0 0.0
  %1496 = vmatpush.msra.mxu0 0.0
  %1497 = vmatpush.msra.mxu0 0.0
  %1498 = vmatpush.msra.mxu0 0.0
  %1499 = vmatpush.msra.mxu0 0.0
  %1500 = vmatpush.msra.mxu0 0.0
  %1501 = vmatpush.msra.mxu0 0.0
  %1502 = vmatpush.msra.mxu0 0.0
  %v1503 = vand.u32 %v1341, 4294901760
  %1504 = vmatpush.msra.mxu0 %v1503
  %v1505 = vand.u32 %v1337, 4294901760
  %1506 = vmatpush.msra.mxu0 %v1505
  %v1507 = vand.u32 %v1351, 4294901760
  %1508 = vmatmul.f32.gmra.mxu0 %v1507
  %v1509 = vpop.f32.mrf.mxu0
  %v1510 = vadd.f32 %v1487, %v1509
  %1511 = vdwg.mxu0
  %1512 = vmatpush.msra.mxu0 0.0
  %1513 = vmatpush.msra.mxu0 0.0
  %1514 = vmatpush.msra.mxu0 0.0
  %1515 = vmatpush.msra.mxu0 0.0
  %1516 = vmatpush.msra.mxu0 0.0
  %1517 = vmatpush.msra.mxu0 0.0
  %1518 = vmatpush.msra.mxu0 0.0
  %1519 = vmatpush.msra.mxu0 0.0
  %1520 = vmatpush.msra.mxu0 0.0
  %1521 = vmatpush.msra.mxu0 0.0
  %1522 = vmatpush.msra.mxu0 0.0
  %1523 = vmatpush.msra.mxu0 0.0
  %1524 = vmatpush.msra.mxu0 0.0
  %1525 = vmatpush.msra.mxu0 0.0
  %v1526 = vand.u32 %v1342, 4294901760
  %1527 = vmatpush.msra.mxu0 %v1526
  %v1528 = vand.u32 %v1338, 4294901760
  %1529 = vmatpush.msra.mxu0 %v1528
  %v1530 = vand.u32 %v1351, 4294901760
  %v1531 = vsub.f32 %v1351, %v1530
  %v1532 = vand.u32 %v1531, 4294901760
  %v1533 = vsub.f32 %v1531, %v1532
  %v1534 = vand.u32 %v1533, 4294901760
  %1535 = vmatmul.f32.gmra.mxu0 %v1534
  %v1536 = vpop.f32.mrf.mxu0
  %v1537 = vadd.f32 %v1348, %v1536
  %1538 = vdwg.mxu0
  %1539 = vmatpush.msra.mxu0 0.0
  %1540 = vmatpush.msra.mxu0 0.0
  %1541 = vmatpush.msra.mxu0 0.0
  %1542 = vmatpush.msra.mxu0 0.0
  %1543 = vmatpush.msra.mxu0 0.0
  %1544 = vmatpush.msra.mxu0 0.0
  %1545 = vmatpush.msra.mxu0 0.0
  %1546 = vmatpush.msra.mxu0 0.0
  %1547 = vmatpush.msra.mxu0 0.0
  %1548 = vmatpush.msra.mxu0 0.0
  %1549 = vmatpush.msra.mxu0 0.0
  %1550 = vmatpush.msra.mxu0 0.0
  %1551 = vmatpush.msra.mxu0 0.0
  %1552 = vmatpush.msra.mxu0 0.0
  %v1553 = vand.u32 %v1342, 4294901760
  %v1554 = vsub.f32 %v1342, %v1553
  %v1555 = vand.u32 %v1554, 4294901760
  %v1556 = vsub.f32 %v1554, %v1555
  %v1557 = vand.u32 %v1556, 4294901760
  %1558 = vmatpush.msra.mxu0 %v1557
  %v1559 = vand.u32 %v1338, 4294901760
  %v1560 = vsub.f32 %v1338, %v1559
  %v1561 = vand.u32 %v1560, 4294901760
  %v1562 = vsub.f32 %v1560, %v1561
  %v1563 = vand.u32 %v1562, 4294901760
  %1564 = vmatpush.msra.mxu0 %v1563
  %v1565 = vand.u32 %v1351, 4294901760
  %1566 = vmatmul.f32.gmra.mxu0 %v1565
  %v1567 = vpop.f32.mrf.mxu0
  %v1568 = vadd.f32 %v1537, %v1567
  %1569 = vdwg.mxu0
  %1570 = vmatpush.msra.mxu0 0.0
  %1571 = vmatpush.msra.mxu0 0.0
  %1572 = vmatpush.msra.mxu0 0.0
  %1573 = vmatpush.msra.mxu0 0.0
  %1574 = vmatpush.msra.mxu0 0.0
  %1575 = vmatpush.msra.mxu0 0.0
  %1576 = vmatpush.msra.mxu0 0.0
  %1577 = vmatpush.msra.mxu0 0.0
  %1578 = vmatpush.msra.mxu0 0.0
  %1579 = vmatpush.msra.mxu0 0.0
  %1580 = vmatpush.msra.mxu0 0.0
  %1581 = vmatpush.msra.mxu0 0.0
  %1582 = vmatpush.msra.mxu0 0.0
  %1583 = vmatpush.msra.mxu0 0.0
  %v1584 = vand.u32 %v1342, 4294901760
  %v1585 = vsub.f32 %v1342, %v1584
  %1586 = vmatpush.msra.mxu0 %v1585
  %v1587 = vand.u32 %v1338, 4294901760
  %v1588 = vsub.f32 %v1338, %v1587
  %1589 = vmatpush.msra.mxu0 %v1588
  %v1590 = vand.u32 %v1351, 4294901760
  %v1591 = vsub.f32 %v1351, %v1590
  %1592 = vmatmul.f32.gmra.mxu0 %v1591
  %v1593 = vpop.f32.mrf.mxu0
  %v1594 = vadd.f32 %v1568, %v1593
  %1595 = vdwg.mxu0
  %1596 = vmatpush.msra.mxu0 0.0
  %1597 = vmatpush.msra.mxu0 0.0
  %1598 = vmatpush.msra.mxu0 0.0
  %1599 = vmatpush.msra.mxu0 0.0
  %1600 = vmatpush.msra.mxu0 0.0
  %1601 = vmatpush.msra.mxu0 0.0
  %1602 = vmatpush.msra.mxu0 0.0
  %1603 = vmatpush.msra.mxu0 0.0
  %1604 = vmatpush.msra.mxu0 0.0
  %1605 = vmatpush.msra.mxu0 0.0
  %1606 = vmatpush.msra.mxu0 0.0
  %1607 = vmatpush.msra.mxu0 0.0
  %1608 = vmatpush.msra.mxu0 0.0
  %1609 = vmatpush.msra.mxu0 0.0
  %v1610 = vand.u32 %v1342, 4294901760
  %1611 = vmatpush.msra.mxu0 %v1610
  %v1612 = vand.u32 %v1338, 4294901760
  %1613 = vmatpush.msra.mxu0 %v1612
  %v1614 = vand.u32 %v1351, 4294901760
  %v1615 = vsub.f32 %v1351, %v1614
  %v1616 = vand.u32 %v1615, 4294901760
  %1617 = vmatmul.f32.gmra.mxu0 %v1616
  %v1618 = vpop.f32.mrf.mxu0
  %v1619 = vadd.f32 %v1594, %v1618
  %1620 = vdwg.mxu0
  %1621 = vmatpush.msra.mxu0 0.0
  %1622 = vmatpush.msra.mxu0 0.0
  %1623 = vmatpush.msra.mxu0 0.0
  %1624 = vmatpush.msra.mxu0 0.0
  %1625 = vmatpush.msra.mxu0 0.0
  %1626 = vmatpush.msra.mxu0 0.0
  %1627 = vmatpush.msra.mxu0 0.0
  %1628 = vmatpush.msra.mxu0 0.0
  %1629 = vmatpush.msra.mxu0 0.0
  %1630 = vmatpush.msra.mxu0 0.0
  %1631 = vmatpush.msra.mxu0 0.0
  %1632 = vmatpush.msra.mxu0 0.0
  %1633 = vmatpush.msra.mxu0 0.0
  %1634 = vmatpush.msra.mxu0 0.0
  %v1635 = vand.u32 %v1342, 4294901760
  %v1636 = vsub.f32 %v1342, %v1635
  %v1637 = vand.u32 %v1636, 4294901760
  %1638 = vmatpush.msra.mxu0 %v1637
  %v1639 = vand.u32 %v1338, 4294901760
  %v1640 = vsub.f32 %v1338, %v1639
  %v1641 = vand.u32 %v1640, 4294901760
  %1642 = vmatpush.msra.mxu0 %v1641
  %v1643 = vand.u32 %v1351, 4294901760
  %1644 = vmatmul.f32.gmra.mxu0 %v1643
  %v1645 = vpop.f32.mrf.mxu0
  %v1646 = vadd.f32 %v1619, %v1645
  %1647 = vdwg.mxu0
  %1648 = vmatpush.msra.mxu0 0.0
  %1649 = vmatpush.msra.mxu0 0.0
  %1650 = vmatpush.msra.mxu0 0.0
  %1651 = vmatpush.msra.mxu0 0.0
  %1652 = vmatpush.msra.mxu0 0.0
  %1653 = vmatpush.msra.mxu0 0.0
  %1654 = vmatpush.msra.mxu0 0.0
  %1655 = vmatpush.msra.mxu0 0.0
  %1656 = vmatpush.msra.mxu0 0.0
  %1657 = vmatpush.msra.mxu0 0.0
  %1658 = vmatpush.msra.mxu0 0.0
  %1659 = vmatpush.msra.mxu0 0.0
  %1660 = vmatpush.msra.mxu0 0.0
  %1661 = vmatpush.msra.mxu0 0.0
  %v1662 = vand.u32 %v1342, 4294901760
  %1663 = vmatpush.msra.mxu0 %v1662
  %v1664 = vand.u32 %v1338, 4294901760
  %1665 = vmatpush.msra.mxu0 %v1664
  %v1666 = vand.u32 %v1351, 4294901760
  %1667 = vmatmul.f32.gmra.mxu0 %v1666
  %v1668 = vpop.f32.mrf.mxu0
  %v1669 = vadd.f32 %v1646, %v1668
  %1670 = vdwg.mxu0
  %1671 = vmatpush.msra.mxu0 0.0
  %1672 = vmatpush.msra.mxu0 0.0
  %1673 = vmatpush.msra.mxu0 0.0
  %1674 = vmatpush.msra.mxu0 0.0
  %1675 = vmatpush.msra.mxu0 0.0
  %1676 = vmatpush.msra.mxu0 0.0
  %1677 = vmatpush.msra.mxu0 0.0
  %1678 = vmatpush.msra.mxu0 0.0
  %1679 = vmatpush.msra.mxu0 0.0
  %1680 = vmatpush.msra.mxu0 0.0
  %1681 = vmatpush.msra.mxu0 0.0
  %1682 = vmatpush.msra.mxu0 0.0
  %1683 = vmatpush.msra.mxu0 0.0
  %1684 = vmatpush.msra.mxu0 0.0
  %v1685 = vand.u32 %v1343, 4294901760
  %1686 = vmatpush.msra.mxu0 %v1685
  %v1687 = vand.u32 %v1339, 4294901760
  %1688 = vmatpush.msra.mxu0 %v1687
  %v1689 = vand.u32 %v1351, 4294901760
  %v1690 = vsub.f32 %v1351, %v1689
  %v1691 = vand.u32 %v1690, 4294901760
  %v1692 = vsub.f32 %v1690, %v1691
  %v1693 = vand.u32 %v1692, 4294901760
  %1694 = vmatmul.f32.gmra.mxu0 %v1693
  %v1695 = vpop.f32.mrf.mxu0
  %v1696 = vadd.f32 %v1348, %v1695
  %1697 = vdwg.mxu0
  %1698 = vmatpush.msra.mxu0 0.0
  %1699 = vmatpush.msra.mxu0 0.0
  %1700 = vmatpush.msra.mxu0 0.0
  %1701 = vmatpush.msra.mxu0 0.0
  %1702 = vmatpush.msra.mxu0 0.0
  %1703 = vmatpush.msra.mxu0 0.0
  %1704 = vmatpush.msra.mxu0 0.0
  %1705 = vmatpush.msra.mxu0 0.0
  %1706 = vmatpush.msra.mxu0 0.0
  %1707 = vmatpush.msra.mxu0 0.0
  %1708 = vmatpush.msra.mxu0 0.0
  %1709 = vmatpush.msra.mxu0 0.0
  %1710 = vmatpush.msra.mxu0 0.0
  %1711 = vmatpush.msra.mxu0 0.0
  %v1712 = vand.u32 %v1343, 4294901760
  %v1713 = vsub.f32 %v1343, %v1712
  %v1714 = vand.u32 %v1713, 4294901760
  %v1715 = vsub.f32 %v1713, %v1714
  %v1716 = vand.u32 %v1715, 4294901760
  %1717 = vmatpush.msra.mxu0 %v1716
  %v1718 = vand.u32 %v1339, 4294901760
  %v1719 = vsub.f32 %v1339, %v1718
  %v1720 = vand.u32 %v1719, 4294901760
  %v1721 = vsub.f32 %v1719, %v1720
  %v1722 = vand.u32 %v1721, 4294901760
  %1723 = vmatpush.msra.mxu0 %v1722
  %v1724 = vand.u32 %v1351, 4294901760
  %1725 = vmatmul.f32.gmra.mxu0 %v1724
  %v1726 = vpop.f32.mrf.mxu0
  %v1727 = vadd.f32 %v1696, %v1726
  %1728 = vdwg.mxu0
  %1729 = vmatpush.msra.mxu0 0.0
  %1730 = vmatpush.msra.mxu0 0.0
  %1731 = vmatpush.msra.mxu0 0.0
  %1732 = vmatpush.msra.mxu0 0.0
  %1733 = vmatpush.msra.mxu0 0.0
  %1734 = vmatpush.msra.mxu0 0.0
  %1735 = vmatpush.msra.mxu0 0.0
  %1736 = vmatpush.msra.mxu0 0.0
  %1737 = vmatpush.msra.mxu0 0.0
  %1738 = vmatpush.msra.mxu0 0.0
  %1739 = vmatpush.msra.mxu0 0.0
  %1740 = vmatpush.msra.mxu0 0.0
  %1741 = vmatpush.msra.mxu0 0.0
  %1742 = vmatpush.msra.mxu0 0.0
  %v1743 = vand.u32 %v1343, 4294901760
  %v1744 = vsub.f32 %v1343, %v1743
  %1745 = vmatpush.msra.mxu0 %v1744
  %v1746 = vand.u32 %v1339, 4294901760
  %v1747 = vsub.f32 %v1339, %v1746
  %1748 = vmatpush.msra.mxu0 %v1747
  %v1749 = vand.u32 %v1351, 4294901760
  %v1750 = vsub.f32 %v1351, %v1749
  %1751 = vmatmul.f32.gmra.mxu0 %v1750
  %v1752 = vpop.f32.mrf.mxu0
  %v1753 = vadd.f32 %v1727, %v1752
  %1754 = vdwg.mxu0
  %1755 = vmatpush.msra.mxu0 0.0
  %1756 = vmatpush.msra.mxu0 0.0
  %1757 = vmatpush.msra.mxu0 0.0
  %1758 = vmatpush.msra.mxu0 0.0
  %1759 = vmatpush.msra.mxu0 0.0
  %1760 = vmatpush.msra.mxu0 0.0
  %1761 = vmatpush.msra.mxu0 0.0
  %1762 = vmatpush.msra.mxu0 0.0
  %1763 = vmatpush.msra.mxu0 0.0
  %1764 = vmatpush.msra.mxu0 0.0
  %1765 = vmatpush.msra.mxu0 0.0
  %1766 = vmatpush.msra.mxu0 0.0
  %1767 = vmatpush.msra.mxu0 0.0
  %1768 = vmatpush.msra.mxu0 0.0
  %v1769 = vand.u32 %v1343, 4294901760
  %1770 = vmatpush.msra.mxu0 %v1769
  %v1771 = vand.u32 %v1339, 4294901760
  %1772 = vmatpush.msra.mxu0 %v1771
  %v1773 = vand.u32 %v1351, 4294901760
  %v1774 = vsub.f32 %v1351, %v1773
  %v1775 = vand.u32 %v1774, 4294901760
  %1776 = vmatmul.f32.gmra.mxu0 %v1775
  %v1777 = vpop.f32.mrf.mxu0
  %v1778 = vadd.f32 %v1753, %v1777
  %1779 = vdwg.mxu0
  %1780 = vmatpush.msra.mxu0 0.0
  %1781 = vmatpush.msra.mxu0 0.0
  %1782 = vmatpush.msra.mxu0 0.0
  %1783 = vmatpush.msra.mxu0 0.0
  %1784 = vmatpush.msra.mxu0 0.0
  %1785 = vmatpush.msra.mxu0 0.0
  %1786 = vmatpush.msra.mxu0 0.0
  %1787 = vmatpush.msra.mxu0 0.0
  %1788 = vmatpush.msra.mxu0 0.0
  %1789 = vmatpush.msra.mxu0 0.0
  %1790 = vmatpush.msra.mxu0 0.0
  %1791 = vmatpush.msra.mxu0 0.0
  %1792 = vmatpush.msra.mxu0 0.0
  %1793 = vmatpush.msra.mxu0 0.0
  %v1794 = vand.u32 %v1343, 4294901760
  %v1795 = vsub.f32 %v1343, %v1794
  %v1796 = vand.u32 %v1795, 4294901760
  %1797 = vmatpush.msra.mxu0 %v1796
  %v1798 = vand.u32 %v1339, 4294901760
  %v1799 = vsub.f32 %v1339, %v1798
  %v1800 = vand.u32 %v1799, 4294901760
  %1801 = vmatpush.msra.mxu0 %v1800
  %v1802 = vand.u32 %v1351, 4294901760
  %1803 = vmatmul.f32.gmra.mxu0 %v1802
  %v1804 = vpop.f32.mrf.mxu0
  %v1805 = vadd.f32 %v1778, %v1804
  %1806 = vdwg.mxu0
  %1807 = vmatpush.msra.mxu0 0.0
  %1808 = vmatpush.msra.mxu0 0.0
  %1809 = vmatpush.msra.mxu0 0.0
  %1810 = vmatpush.msra.mxu0 0.0
  %1811 = vmatpush.msra.mxu0 0.0
  %1812 = vmatpush.msra.mxu0 0.0
  %1813 = vmatpush.msra.mxu0 0.0
  %1814 = vmatpush.msra.mxu0 0.0
  %1815 = vmatpush.msra.mxu0 0.0
  %1816 = vmatpush.msra.mxu0 0.0
  %1817 = vmatpush.msra.mxu0 0.0
  %1818 = vmatpush.msra.mxu0 0.0
  %1819 = vmatpush.msra.mxu0 0.0
  %1820 = vmatpush.msra.mxu0 0.0
  %v1821 = vand.u32 %v1343, 4294901760
  %1822 = vmatpush.msra.mxu0 %v1821
  %v1823 = vand.u32 %v1339, 4294901760
  %1824 = vmatpush.msra.mxu0 %v1823
  %v1825 = vand.u32 %v1351, 4294901760
  %1826 = vmatmul.f32.gmra.mxu0 %v1825
  %v1827 = vpop.f32.mrf.mxu0
  %v1828 = vadd.f32 %v1805, %v1827
  %1829 = vdwg.mxu0
  %1830 = vmatpush.msra.mxu0 0.0
  %1831 = vmatpush.msra.mxu0 0.0
  %1832 = vmatpush.msra.mxu0 0.0
  %1833 = vmatpush.msra.mxu0 0.0
  %1834 = vmatpush.msra.mxu0 0.0
  %1835 = vmatpush.msra.mxu0 0.0
  %1836 = vmatpush.msra.mxu0 0.0
  %1837 = vmatpush.msra.mxu0 0.0
  %1838 = vmatpush.msra.mxu0 0.0
  %1839 = vmatpush.msra.mxu0 0.0
  %1840 = vmatpush.msra.mxu0 0.0
  %1841 = vmatpush.msra.mxu0 0.0
  %1842 = vmatpush.msra.mxu0 0.0
  %1843 = vmatpush.msra.mxu0 0.0
  %v1844 = vand.u32 %v1344, 4294901760
  %1845 = vmatpush.msra.mxu0 %v1844
  %v1846 = vand.u32 %v1340, 4294901760
  %1847 = vmatpush.msra.mxu0 %v1846
  %v1848 = vand.u32 %v1351, 4294901760
  %v1849 = vsub.f32 %v1351, %v1848
  %v1850 = vand.u32 %v1849, 4294901760
  %v1851 = vsub.f32 %v1849, %v1850
  %v1852 = vand.u32 %v1851, 4294901760
  %1853 = vmatmul.f32.gmra.mxu0 %v1852
  %v1854 = vpop.f32.mrf.mxu0
  %v1855 = vadd.f32 %v1348, %v1854
  %1856 = vdwg.mxu0
  %1857 = vmatpush.msra.mxu0 0.0
  %1858 = vmatpush.msra.mxu0 0.0
  %1859 = vmatpush.msra.mxu0 0.0
  %1860 = vmatpush.msra.mxu0 0.0
  %1861 = vmatpush.msra.mxu0 0.0
  %1862 = vmatpush.msra.mxu0 0.0
  %1863 = vmatpush.msra.mxu0 0.0
  %1864 = vmatpush.msra.mxu0 0.0
  %1865 = vmatpush.msra.mxu0 0.0
  %1866 = vmatpush.msra.mxu0 0.0
  %1867 = vmatpush.msra.mxu0 0.0
  %1868 = vmatpush.msra.mxu0 0.0
  %1869 = vmatpush.msra.mxu0 0.0
  %1870 = vmatpush.msra.mxu0 0.0
  %v1871 = vand.u32 %v1344, 4294901760
  %v1872 = vsub.f32 %v1344, %v1871
  %v1873 = vand.u32 %v1872, 4294901760
  %v1874 = vsub.f32 %v1872, %v1873
  %v1875 = vand.u32 %v1874, 4294901760
  %1876 = vmatpush.msra.mxu0 %v1875
  %v1877 = vand.u32 %v1340, 4294901760
  %v1878 = vsub.f32 %v1340, %v1877
  %v1879 = vand.u32 %v1878, 4294901760
  %v1880 = vsub.f32 %v1878, %v1879
  %v1881 = vand.u32 %v1880, 4294901760
  %1882 = vmatpush.msra.mxu0 %v1881
  %v1883 = vand.u32 %v1351, 4294901760
  %1884 = vmatmul.f32.gmra.mxu0 %v1883
  %v1885 = vpop.f32.mrf.mxu0
  %v1886 = vadd.f32 %v1855, %v1885
  %1887 = vdwg.mxu0
  %1888 = vmatpush.msra.mxu0 0.0
  %1889 = vmatpush.msra.mxu0 0.0
  %1890 = vmatpush.msra.mxu0 0.0
  %1891 = vmatpush.msra.mxu0 0.0
  %1892 = vmatpush.msra.mxu0 0.0
  %1893 = vmatpush.msra.mxu0 0.0
  %1894 = vmatpush.msra.mxu0 0.0
  %1895 = vmatpush.msra.mxu0 0.0
  %1896 = vmatpush.msra.mxu0 0.0
  %1897 = vmatpush.msra.mxu0 0.0
  %1898 = vmatpush.msra.mxu0 0.0
  %1899 = vmatpush.msra.mxu0 0.0
  %1900 = vmatpush.msra.mxu0 0.0
  %1901 = vmatpush.msra.mxu0 0.0
  %v1902 = vand.u32 %v1344, 4294901760
  %v1903 = vsub.f32 %v1344, %v1902
  %1904 = vmatpush.msra.mxu0 %v1903
  %v1905 = vand.u32 %v1340, 4294901760
  %v1906 = vsub.f32 %v1340, %v1905
  %1907 = vmatpush.msra.mxu0 %v1906
  %v1908 = vand.u32 %v1351, 4294901760
  %v1909 = vsub.f32 %v1351, %v1908
  %1910 = vmatmul.f32.gmra.mxu0 %v1909
  %v1911 = vpop.f32.mrf.mxu0
  %v1912 = vadd.f32 %v1886, %v1911
  %1913 = vdwg.mxu0
  %1914 = vmatpush.msra.mxu0 0.0
  %1915 = vmatpush.msra.mxu0 0.0
  %1916 = vmatpush.msra.mxu0 0.0
  %1917 = vmatpush.msra.mxu0 0.0
  %1918 = vmatpush.msra.mxu0 0.0
  %1919 = vmatpush.msra.mxu0 0.0
  %1920 = vmatpush.msra.mxu0 0.0
  %1921 = vmatpush.msra.mxu0 0.0
  %1922 = vmatpush.msra.mxu0 0.0
  %1923 = vmatpush.msra.mxu0 0.0
  %1924 = vmatpush.msra.mxu0 0.0
  %1925 = vmatpush.msra.mxu0 0.0
  %1926 = vmatpush.msra.mxu0 0.0
  %1927 = vmatpush.msra.mxu0 0.0
  %v1928 = vand.u32 %v1344, 4294901760
  %1929 = vmatpush.msra.mxu0 %v1928
  %v1930 = vand.u32 %v1340, 4294901760
  %1931 = vmatpush.msra.mxu0 %v1930
  %v1932 = vand.u32 %v1351, 4294901760
  %v1933 = vsub.f32 %v1351, %v1932
  %v1934 = vand.u32 %v1933, 4294901760
  %1935 = vmatmul.f32.gmra.mxu0 %v1934
  %v1936 = vpop.f32.mrf.mxu0
  %v1937 = vadd.f32 %v1912, %v1936
  %1938 = vdwg.mxu0
  %1939 = vmatpush.msra.mxu0 0.0
  %1940 = vmatpush.msra.mxu0 0.0
  %1941 = vmatpush.msra.mxu0 0.0
  %1942 = vmatpush.msra.mxu0 0.0
  %1943 = vmatpush.msra.mxu0 0.0
  %1944 = vmatpush.msra.mxu0 0.0
  %1945 = vmatpush.msra.mxu0 0.0
  %1946 = vmatpush.msra.mxu0 0.0
  %1947 = vmatpush.msra.mxu0 0.0
  %1948 = vmatpush.msra.mxu0 0.0
  %1949 = vmatpush.msra.mxu0 0.0
  %1950 = vmatpush.msra.mxu0 0.0
  %1951 = vmatpush.msra.mxu0 0.0
  %1952 = vmatpush.msra.mxu0 0.0
  %v1953 = vand.u32 %v1344, 4294901760
  %v1954 = vsub.f32 %v1344, %v1953
  %v1955 = vand.u32 %v1954, 4294901760
  %1956 = vmatpush.msra.mxu0 %v1955
  %v1957 = vand.u32 %v1340, 4294901760
  %v1958 = vsub.f32 %v1340, %v1957
  %v1959 = vand.u32 %v1958, 4294901760
  %1960 = vmatpush.msra.mxu0 %v1959
  %v1961 = vand.u32 %v1351, 4294901760
  %1962 = vmatmul.f32.gmra.mxu0 %v1961
  %v1963 = vpop.f32.mrf.mxu0
  %v1964 = vadd.f32 %v1937, %v1963
  %1965 = vdwg.mxu0
  %1966 = vmatpush.msra.mxu0 0.0
  %1967 = vmatpush.msra.mxu0 0.0
  %1968 = vmatpush.msra.mxu0 0.0
  %1969 = vmatpush.msra.mxu0 0.0
  %1970 = vmatpush.msra.mxu0 0.0
  %1971 = vmatpush.msra.mxu0 0.0
  %1972 = vmatpush.msra.mxu0 0.0
  %1973 = vmatpush.msra.mxu0 0.0
  %1974 = vmatpush.msra.mxu0 0.0
  %1975 = vmatpush.msra.mxu0 0.0
  %1976 = vmatpush.msra.mxu0 0.0
  %1977 = vmatpush.msra.mxu0 0.0
  %1978 = vmatpush.msra.mxu0 0.0
  %1979 = vmatpush.msra.mxu0 0.0
  %v1980 = vand.u32 %v1344, 4294901760
  %1981 = vmatpush.msra.mxu0 %v1980
  %v1982 = vand.u32 %v1340, 4294901760
  %1983 = vmatpush.msra.mxu0 %v1982
  %v1984 = vand.u32 %v1351, 4294901760
  %1985 = vmatmul.f32.gmra.mxu0 %v1984
  %v1986 = vpop.f32.mrf.mxu0
  %v1987 = vadd.f32 %v1964, %v1986
  %1988 = vdwg.mxu0
  %v1989 = vadd.f32 %v1510, %v19
  %v1990 = vadd.f32 %v1669, %v20
  %v1991 = vadd.f32 %v1828, %v25
  %v1992 = vadd.f32 %v1987, %v26
  %v1995 = vrot.slane %v1990, 4
  %v1996 = vsel %vm47, %v1989, %v1995
  %1998 = vst [vmem:[%s3] sm:$0xff] %v1996
  %v2001 = vrot.slane %v1992, 4
  %v2002 = vsel %vm47, %v1991, %v2001
  %s2004 = scalar_lea.vmem %s3, 8
  %2005 = vst [vmem:[%s2004] sm:$0xff] %v2002
  // Predicated region
  $region14: #{inverted_residual_forward.1} parent=0 // pred_check
    _
  $region15: #{inverted_residual_forward.1} parent=0 // pred_check_branch
    %2007 = sbr.rel (0) target = $region17
  $region16: #{inverted_residual_forward.1} parent=0 // pred_region
    _
  $region17: #{inverted_residual_forward.1} parent=0 // pred_fallthru
    _
  // Predicated region
  $region18: #{inverted_residual_forward.1} parent=0 // pred_check
    _
  $region19: #{inverted_residual_forward.1} parent=0 // pred_check_branch
    %2009 = sbr.rel (0) target = $region21
  $region20: #{inverted_residual_forward.1} parent=0 // pred_region
    _
  $region21: #{inverted_residual_forward.1} parent=0 // pred_fallthru
    _

</llo_original>
